<compile_context>
chip_gen: v7x
topology: tpu7x:2x2x1
jax: 0.10.0
libtpu: 0.0.40
codegen_flags: <defaults>
</compile_context>

<pallas_src>
import functools
import math

import jax
import jax.numpy as jnp
from jax.experimental import pallas as pl
from jax.experimental.pallas import tpu as pltpu

ACT_DTYPE = jnp.bfloat16
LN_EPS = 1e-5


# ----------------------------------------------------------------------------
# tiling / VMEM-budget helpers
# ----------------------------------------------------------------------------
@functools.lru_cache(maxsize=None)
def _row_tile_target():
    """1024 rows on v5e/v6e (128 MiB VMEM, fewer weight re-fetches);
    512 rows on v7x (64 MiB physical VMEM)."""
    try:
        kind = jax.devices()[0].device_kind.lower()
    except Exception:
        return 512
    return 512 if "7" in kind else 1024


def _tile(dim, target, align):
    """Largest multiple of `align` <= target that divides `dim`, else full dim."""
    if dim <= target:
        return dim
    t = (target // align) * align
    while t >= align:
        if dim % t == 0:
            return t
        t -= align
    return dim


def _row_tile(M, align=16):
    """Row (M) tile + padded row count.  bf16 outputs want 16-aligned row
    tiles (sublane-dense stores); awkward M is padded rather than falling back
    to one full-extent block (which could blow the v7x VMEM budget)."""
    target = _row_tile_target()
    if M <= target:
        return M, M
    tm = max((target // align) * align, align)
    m_pad = ((M + tm - 1) // tm) * tm
    return tm, m_pad


def _pad_rows(x, m_pad):
    if x.shape[0] == m_pad:
        return x
    pad = [(0, m_pad - x.shape[0])] + [(0, 0)] * (x.ndim - 1)
    return jnp.pad(x, pad)


def _vmem_limit(working_set_bytes):
    """Explicit scoped-VMEM budget: working set + headroom, capped below the
    smallest physical VMEM across generations (v7x: 64 MiB)."""
    return int(min(max(int(working_set_bytes) + (6 << 20), 32 << 20), 56 << 20))


# ----------------------------------------------------------------------------
# Pallas kernels
# ----------------------------------------------------------------------------
def _linear_kernel(x_ref, w_ref, b_ref, o_ref, acc_ref, *, activation):
    """o = act(x @ w + b), accumulated over the k grid axis in f32."""
    k = pl.program_id(2)

    @pl.when(k == 0)
    def _init():
        acc_ref[...] = jnp.zeros_like(acc_ref)

    acc_ref[...] += jnp.dot(x_ref[...], w_ref[...],
                            preferred_element_type=jnp.float32)

    @pl.when(k == pl.num_programs(2) - 1)
    def _fin():
        y = acc_ref[...] + b_ref[...].astype(jnp.float32)
        if activation == "gelu":
            # TODO(synk): HF RoBERTa uses exact (erf) GELU; this is tanh-approx.
            y = jax.nn.gelu(y)
        o_ref[...] = y.astype(o_ref.dtype)


def _linear_ln_body(x_ref, w_ref, b_ref, g_ref, bb_ref, o_ref, acc_ref,
                    r_ref, activation, eps):
    """o = LayerNorm(act(x @ w + b) [+ residual]) * gamma + beta (fused)."""
    k = pl.program_id(1)

    @pl.when(k == 0)
    def _init():
        acc_ref[...] = jnp.zeros_like(acc_ref)

    acc_ref[...] += jnp.dot(x_ref[...], w_ref[...],
                            preferred_element_type=jnp.float32)

    @pl.when(k == pl.num_programs(1) - 1)
    def _fin():
        y = acc_ref[...] + b_ref[...].astype(jnp.float32)
        if activation == "gelu":
            y = jax.nn.gelu(y)
        if r_ref is not None:
            y = y + r_ref[...].astype(jnp.float32)
        mean = jnp.mean(y, axis=-1, keepdims=True)
        var = jnp.mean(jnp.square(y - mean), axis=-1, keepdims=True)
        y = (y - mean) * jax.lax.rsqrt(var + eps)
        o_ref[...] = (y * g_ref[...].astype(jnp.float32)
                      + bb_ref[...].astype(jnp.float32)).astype(o_ref.dtype)


def _linear_ln_res_kernel(x_ref, w_ref, b_ref, r_ref, g_ref, bb_ref,
                          o_ref, acc_ref, *, activation, eps):
    _linear_ln_body(x_ref, w_ref, b_ref, g_ref, bb_ref, o_ref, acc_ref,
                    r_ref, activation, eps)


def _linear_ln_kernel(x_ref, w_ref, b_ref, g_ref, bb_ref,
                      o_ref, acc_ref, *, activation, eps):
    _linear_ln_body(x_ref, w_ref, b_ref, g_ref, bb_ref, o_ref, acc_ref,
                    None, activation, eps)


def _layernorm_kernel(x_ref, g_ref, b_ref, o_ref, *, eps):
    x = x_ref[...].astype(jnp.float32)
    mean = jnp.mean(x, axis=-1, keepdims=True)
    var = jnp.mean(jnp.square(x - mean), axis=-1, keepdims=True)
    y = (x - mean) * jax.lax.rsqrt(var + eps)
    o_ref[...] = (y * g_ref[...].astype(jnp.float32)
                  + b_ref[...].astype(jnp.float32)).astype(o_ref.dtype)


def _attention_kernel(qkv_ref, m_ref, o_ref, kt_ref, *, n_heads, scale, tq):
    """One (batch, q-tile) step over fused QKV.
    qkv_ref: (1, S, 3H) bf16; m_ref: (1, 1, S) f32; o_ref: (1, tq, H) bf16;
    kt_ref: (H, S) bf16 VMEM scratch holding K^T, built once per batch elt."""
    S = qkv_ref.shape[1]
    H = qkv_ref.shape[2] // 3
    D = H // n_heads
    qi = pl.program_id(1)
    q_start = pl.multiple_of(qi * tq, tq)

    # K^T once per batch element (qi axis is "arbitrary": scratch carries it).
    @pl.when(qi == 0)
    def _build_kt():
        kt_ref[...] = qkv_ref[0, :, pl.ds(H, H)].T

    neg = (m_ref[0].astype(jnp.float32) - 1.0) * 1e9        # (1, S) key mask

    outs = []
    for h in range(n_heads):
        # scale q once per head slice (S*H muls total, not n_heads*S^2)
        qh = qkv_ref[0, pl.ds(q_start, tq), pl.ds(h * D, D)] * scale   # (tq, D) bf16
        kth = kt_ref[pl.ds(h * D, D), :]                               # (D, S) bf16
        vh = qkv_ref[0, :, pl.ds(2 * H + h * D, D)]                    # (S, D) bf16

        s = jnp.dot(qh, kth, preferred_element_type=jnp.float32) + neg  # (tq, S) f32
        s = s - jnp.max(s, axis=-1, keepdims=True)
        p = jnp.exp(s)                                       # un-normalized probs
        l = jnp.sum(p, axis=-1, keepdims=True)
        oh = jnp.dot(p.astype(vh.dtype), vh,
                     preferred_element_type=jnp.float32)     # (tq, D) f32
        # normalize the small (tq, D) output, not the (tq, S) probs; exact div
        outs.append((oh / l).astype(o_ref.dtype))            # bf16 before concat

    o_ref[0] = jnp.concatenate(outs, axis=-1)                # one lane-dense store


def _mlm_tail_kernel(x_ref, w1_ref, b1_ref, g_ref, bb_ref, w2_ref, b2_ref,
                     o_ref, *, eps):
    """Fused MLM head tail: LN(GELU(x @ w1 + b1)) @ w2 + b2 (label columns)."""
    y = jnp.dot(x_ref[...], w1_ref[...], preferred_element_type=jnp.float32)
    y = y + b1_ref[...].astype(jnp.float32)
    # TODO(synk): HF RoBERTa uses exact (erf) GELU; this is tanh-approx.
    y = jax.nn.gelu(y)
    mean = jnp.mean(y, axis=-1, keepdims=True)
    var = jnp.mean(jnp.square(y - mean), axis=-1, keepdims=True)
    y = (y - mean) * jax.lax.rsqrt(var + eps)
    y = y * g_ref[...].astype(jnp.float32) + bb_ref[...].astype(jnp.float32)
    logits = jnp.dot(y.astype(w2_ref.dtype), w2_ref[...],
                     preferred_element_type=jnp.float32)
    o_ref[...] = logits + b2_ref[...].astype(jnp.float32)


# ----------------------------------------------------------------------------
# Pallas wrappers
# ----------------------------------------------------------------------------
def linear(x, w, b, activation=None, out_dtype=ACT_DTYPE):
    M, K = x.shape
    N = w.shape[1]
    tm, m_pad = _row_tile(M)
    x_p = _pad_rows(x, m_pad)
    tn = _tile(N, 512, 128)
    tk = _tile(K, 512, 128)
    grid = (m_pad // tm, N // tn, K // tk)
    work = 2 * 2 * (tm * tk + tk * tn + tm * tn + tn) + 4 * tm * tn
    out = pl.pallas_call(
        functools.partial(_linear_kernel, activation=activation),
        out_shape=jax.ShapeDtypeStruct((m_pad, N), out_dtype),
        grid=grid,
        in_specs=[
            pl.BlockSpec((tm, tk), lambda i, j, k: (i, k)),
            pl.BlockSpec((tk, tn), lambda i, j, k: (k, j)),
            pl.BlockSpec((1, tn), lambda i, j, k: (0, j)),
        ],
        out_specs=pl.BlockSpec((tm, tn), lambda i, j, k: (i, j)),
        scratch_shapes=[pltpu.VMEM((tm, tn), jnp.float32)],
        compiler_params=pltpu.CompilerParams(
            dimension_semantics=("parallel", "parallel", "arbitrary"),
            vmem_limit_bytes=_vmem_limit(work)),
    )(x_p, w, b.reshape(1, N))
    return out if m_pad == M else out[:M]


def linear_ln(x, w, b, gamma, beta, residual=None, activation=None,
              out_dtype=ACT_DTYPE):
    """Matmul with fused bias / GELU / residual / LayerNorm epilogue.
    The full output feature dim N is kept in one tile (LayerNorm axis)."""
    M, K = x.shape
    N = w.shape[1]
    tm, m_pad = _row_tile(M)
    x_p = _pad_rows(x, m_pad)
    tk = _tile(K, 512, 128)
    grid = (m_pad // tm, K // tk)
    work = (2 * 2 * (tm * tk + tk * N + 2 * tm * N + 3 * N) + 4 * tm * N)

    front_specs = [
        pl.BlockSpec((tm, tk), lambda i, k: (i, k)),
        pl.BlockSpec((tk, N), lambda i, k: (k, 0)),
        pl.BlockSpec((1, N), lambda i, k: (0, 0)),
    ]
    vec_spec = pl.BlockSpec((1, N), lambda i, k: (0, 0))

    if residual is not None:
        kernel = functools.partial(_linear_ln_res_kernel,
                                   activation=activation, eps=LN_EPS)
        in_specs = front_specs + [pl.BlockSpec((tm, N), lambda i, k: (i, 0)),
                                  vec_spec, vec_spec]
        args = (x_p, w, b.reshape(1, N), _pad_rows(residual, m_pad),
                gamma.reshape(1, N), beta.reshape(1, N))
    else:
        kernel = functools.partial(_linear_ln_kernel,
                                   activation=activation, eps=LN_EPS)
        in_specs = front_specs + [vec_spec, vec_spec]
        args = (x_p, w, b.reshape(1, N),
                gamma.reshape(1, N), beta.reshape(1, N))

    out = pl.pallas_call(
        kernel,
        out_shape=jax.ShapeDtypeStruct((m_pad, N), out_dtype),
        grid=grid,
        in_specs=in_specs,
        out_specs=pl.BlockSpec((tm, N), lambda i, k: (i, 0)),
        scratch_shapes=[pltpu.VMEM((tm, N), jnp.float32)],
        compiler_params=pltpu.CompilerParams(
            dimension_semantics=("parallel", "arbitrary"),
            vmem_limit_bytes=_vmem_limit(work)),
    )(*args)
    return out if m_pad == M else out[:M]


def layernorm(x, gamma, beta, out_dtype=ACT_DTYPE):
    M, H = x.shape
    tm, m_pad = _row_tile(M)
    x_p = _pad_rows(x, m_pad)
    work = 2 * 2 * (2 * tm * H + 2 * H) + 4 * tm * H
    out = pl.pallas_call(
        functools.partial(_layernorm_kernel, eps=LN_EPS),
        out_shape=jax.ShapeDtypeStruct((m_pad, H), out_dtype),
        grid=(m_pad // tm,),
        in_specs=[
            pl.BlockSpec((tm, H), lambda i: (i, 0)),
            pl.BlockSpec((1, H), lambda i: (0, 0)),
            pl.BlockSpec((1, H), lambda i: (0, 0)),
        ],
        out_specs=pl.BlockSpec((tm, H), lambda i: (i, 0)),
        compiler_params=pltpu.CompilerParams(
            dimension_semantics=("parallel",),
            vmem_limit_bytes=_vmem_limit(work)),
    )(x_p, gamma.reshape(1, H), beta.reshape(1, H))
    return out if m_pad == M else out[:M]


def multihead_attention(qkv, attn_mask, n_heads):
    """qkv: (B, S, 3H) bf16 fused projection output (no HBM Q/K/V split)."""
    B, S, H3 = qkv.shape
    H = H3 // 3
    D = H // n_heads
    tq = _tile(S, 128, 16)          # query tiles -> more grid steps (v7x 2-TC)
    mask3 = attn_mask.astype(jnp.float32).reshape(B, 1, S)
    work = (2 * 2 * S * H3 + 2 * 4 * S + 2 * 2 * tq * H
            + 2 * H * S + 8 * tq * S + 4 * tq * H)
    return pl.pallas_call(
        functools.partial(_attention_kernel, n_heads=n_heads,
                          scale=1.0 / math.sqrt(D), tq=tq),
        out_shape=jax.ShapeDtypeStruct((B, S, H), ACT_DTYPE),
        grid=(B, S // tq),
        in_specs=[
            pl.BlockSpec((1, S, H3), lambda b, qi: (b, 0, 0)),   # fused QKV
            pl.BlockSpec((1, 1, S), lambda b, qi: (b, 0, 0)),
        ],
        out_specs=pl.BlockSpec((1, tq, H), lambda b, qi: (b, qi, 0)),
        scratch_shapes=[pltpu.VMEM((H, S), ACT_DTYPE)],          # K^T cache
        compiler_params=pltpu.CompilerParams(
            dimension_semantics=("parallel", "arbitrary"),
            vmem_limit_bytes=_vmem_limit(work)),
    )(qkv, mask3)


def mlm_prompt_head(h_mask, mlm_w, mlm_b, ln_g, ln_b, dec_w, dec_b):
    """Fused tail: dense + GELU + LayerNorm + label-word decoder in one call.
    Decoder output is padded to 128 lanes inside the call and sliced outside."""
    B, H = h_mask.shape
    L = dec_w.shape[1]
    L_pad = max(128, ((L + 127) // 128) * 128)
    if L_pad != L:
        dec_w = jnp.pad(dec_w, ((0, 0), (0, L_pad - L)))
        dec_b = jnp.pad(dec_b, ((0, L_pad - L),))
    work = 2 * (B * H + H * H + H * L_pad + 5 * H + L_pad) + 4 * B * (H + L_pad)
    out = pl.pallas_call(
        functools.partial(_mlm_tail_kernel, eps=LN_EPS),
        out_shape=jax.ShapeDtypeStruct((B, L_pad), jnp.float32),
        grid=(1,),
        in_specs=[
            pl.BlockSpec((B, H), lambda i: (0, 0)),
            pl.BlockSpec((H, H), lambda i: (0, 0)),
            pl.BlockSpec((1, H), lambda i: (0, 0)),
            pl.BlockSpec((1, H), lambda i: (0, 0)),
            pl.BlockSpec((1, H), lambda i: (0, 0)),
            pl.BlockSpec((H, L_pad), lambda i: (0, 0)),
            pl.BlockSpec((1, L_pad), lambda i: (0, 0)),
        ],
        out_specs=pl.BlockSpec((B, L_pad), lambda i: (0, 0)),
        compiler_params=pltpu.CompilerParams(
            dimension_semantics=("arbitrary",),
            vmem_limit_bytes=_vmem_limit(work)),
    )(h_mask, mlm_w, mlm_b.reshape(1, H), ln_g.reshape(1, H),
      ln_b.reshape(1, H), dec_w, dec_b.reshape(1, L_pad))
    return out[:, :L]


# ----------------------------------------------------------------------------
# Synthetic RoBERTa-MLM parameters (deterministic)
# ----------------------------------------------------------------------------
def init_params(key, vocab, max_pos, hidden, ffn, n_layers):
    wdt = ACT_DTYPE

    def dense(k, fi, fo):
        w = (jax.random.normal(k, (fi, fo), jnp.float32) * 0.02).astype(wdt)
        return w, jnp.zeros((fo,), wdt)

    keys = jax.random.split(key, n_layers + 4)
    params = {
        "tok_emb": (jax.random.normal(keys[0], (vocab, hidden), jnp.float32) * 0.02).astype(wdt),
        "pos_emb": (jax.random.normal(keys[1], (max_pos, hidden), jnp.float32) * 0.02).astype(wdt),
        "emb_ln_g": jnp.ones((hidden,), jnp.float32),
        "emb_ln_b": jnp.zeros((hidden,), jnp.float32),
        "layers": [],
    }
    for l in range(n_layers):
        lk = jax.random.split(keys[2 + l], 4)
        wqkv, bqkv = dense(lk[0], hidden, 3 * hidden)   # fused Q/K/V projection
        wo, bo = dense(lk[1], hidden, hidden)
        w1, b1 = dense(lk[2], hidden, ffn)
        w2, b2 = dense(lk[3], ffn, hidden)
        params["layers"].append({
            "wqkv": wqkv, "bqkv": bqkv, "wo": wo, "bo": bo,
            "w1": w1, "b1": b1, "w2": w2, "b2": b2,
            "ln1_g": jnp.ones((hidden,), jnp.float32),
            "ln1_b": jnp.zeros((hidden,), jnp.float32),
            "ln2_g": jnp.ones((hidden,), jnp.float32),
            "ln2_b": jnp.zeros((hidden,), jnp.float32),
        })
    hk = jax.random.split(keys[2 + n_layers], 2)
    mlm_w, mlm_b = dense(hk[0], hidden, hidden)
    dec_w, dec_b = dense(hk[1], hidden, vocab)
    params.update({
        "mlm_dense_w": mlm_w, "mlm_dense_b": mlm_b,
        "mlm_ln_g": jnp.ones((hidden,), jnp.float32),
        "mlm_ln_b": jnp.zeros((hidden,), jnp.float32),
        "decoder_w": dec_w, "decoder_b": dec_b,
    })
    return params


# ----------------------------------------------------------------------------
# Model forward
# ----------------------------------------------------------------------------
def transformer_layer(x2, attn_mask, p, n_heads, B, S, H):
    """x2: (B*S, H) bf16 -> (B*S, H) bf16."""
    qkv = linear(x2, p["wqkv"], p["bqkv"])                    # (B*S, 3H) fused
    # metadata-only reshape; q/k/v are sliced on the lane axis in the kernel
    attn = multihead_attention(qkv.reshape(B, S, 3 * H), attn_mask, n_heads)

    # output projection + bias + residual + LayerNorm fused
    h = linear_ln(attn.reshape(B * S, H), p["wo"], p["bo"],
                  p["ln1_g"], p["ln1_b"], residual=x2)
    # FFN: (dense + GELU), then (dense + residual + LayerNorm) fused
    ff = linear(h, p["w1"], p["b1"], activation="gelu")
    out = linear_ln(ff, p["w2"], p["b2"], p["ln2_g"], p["ln2_b"], residual=h)
    return out


def roberta_prompt_forward(params, tokens, attention_mask, mask_pos,
                           label_word_list, n_heads):
    """Mirrors RobertaPromptModel.forward: returns (batch, num_label_words)."""
    B, S = tokens.shape
    H = params["tok_emb"].shape[1]
    mask_pos = jnp.reshape(mask_pos, (-1,))                   # squeeze -> (B,)
    label_ids = jnp.asarray(label_word_list, dtype=jnp.int32)

    # Embeddings (gathers are plain-JAX glue; LayerNorm runs in Pallas).
    # TODO(synk): real RoBERTa offsets position ids by padding_idx + mask.
    x = params["tok_emb"][tokens] + params["pos_emb"][jnp.arange(S)][None, :, :]
    x2 = layernorm(x.reshape(B * S, H), params["emb_ln_g"], params["emb_ln_b"])

    for lp in params["layers"]:
        x2 = transformer_layer(x2, attention_mask, lp, n_heads, B, S, H)
    x = x2.reshape(B, S, H)

    # Gather the [MASK]-position hidden state BEFORE the MLM head so the
    # whole tail only sees (B, H) instead of (B*S, H).
    h_mask = x[jnp.arange(B), mask_pos]                        # (B, H)

    # Decoder restricted to the label-word columns, fused with the MLM head.
    dec_w = params["decoder_w"][:, label_ids]                  # (H, num_labels)
    dec_b = params["decoder_b"][label_ids]                     # (num_labels,)
    logits = mlm_prompt_head(h_mask, params["mlm_dense_w"], params["mlm_dense_b"],
                             params["mlm_ln_g"], params["mlm_ln_b"],
                             dec_w, dec_b)                     # (B, num_labels) f32
    return logits


# ----------------------------------------------------------------------------
if __name__ == "__main__":
    B, S = 2, 8
    HIDDEN, N_HEADS, FFN = 32, 2, 64
    VOCAB, MAX_POS, N_LAYERS = 64, 16, 2
    LABEL_WORD_LIST = (5, 17, 42)          # synthetic label-word token ids

    key = jax.random.PRNGKey(0)
    pkey, tkey = jax.random.split(key)
    params = init_params(pkey, VOCAB, MAX_POS, HIDDEN, FFN, N_LAYERS)

    tokens = jax.random.randint(tkey, (B, S), 0, VOCAB, dtype=jnp.int32)
    attention_mask = jnp.ones((B, S), dtype=jnp.float32).at[1, 6:].set(0.0)
    mask_pos = jnp.array([[3], [2]], dtype=jnp.int32)          # (B, 1)

    forward = jax.jit(roberta_prompt_forward, static_argnums=(4, 5))
    logits = forward(params, tokens, attention_mask, mask_pos,
                     LABEL_WORD_LIST, N_HEADS)
    logits = jax.block_until_ready(logits)
    assert logits.shape == (B, len(LABEL_WORD_LIST))
    assert bool(jnp.all(jnp.isfinite(logits)))
    print("KERNEL_OK")
</pallas_src>

<mosaic_0001>
module attributes {stable_mosaic.version = 11 : i64} {
  func.func @_layernorm_kernel(%arg0: i32, %arg1: memref<16x32xbf16, #tpu.memory_space<vmem>>, %arg2: memref<1x32xf32, #tpu.memory_space<vmem>>, %arg3: memref<1x32xf32, #tpu.memory_space<vmem>>, %arg4: memref<16x32xbf16, #tpu.memory_space<vmem>>) attributes {dimension_semantics = [#tpu.dimension_semantics<parallel>], iteration_bounds = array<i64: 1>, scalar_prefetch = 0 : i64, scratch_operands = 0 : i64, tpu.core_type = #tpu.core_type<tc>, window_params = [{transform_indices = @transform_0, window_bounds = array<i64: 16, 32>}, {pipeline_mode = #tpu.pipeline_mode<synchronous>, transform_indices = @transform_1, window_bounds = array<i64: 1, 32>}, {pipeline_mode = #tpu.pipeline_mode<synchronous>, transform_indices = @transform_2, window_bounds = array<i64: 1, 32>}, {transform_indices = @transform_3, window_bounds = array<i64: 16, 32>}]} {
    %c0 = arith.constant 0 : index
    %c0_0 = arith.constant 0 : index
    %0 = vector.load %arg1[%c0, %c0_0] : memref<16x32xbf16, #tpu.memory_space<vmem>>, vector<16x32xbf16>
    %1 = arith.extf %0 : vector<16x32xbf16> to vector<16x32xf32>
    %cst = arith.constant dense<0.000000e+00> : vector<16xf32>
    %2 = vector.multi_reduction <add>, %1, %cst [1] : vector<16x32xf32> to vector<16xf32>
    %3 = vector.shape_cast %2 : vector<16xf32> to vector<16x1xf32>
    %cst_1 = arith.constant 3.200000e+01 : f32
    %4 = vector.broadcast %cst_1 : f32 to vector<16x1xf32>
    %5 = arith.divf %3, %4 : vector<16x1xf32>
    %6 = vector.broadcast %5 : vector<16x1xf32> to vector<16x32xf32>
    %7 = arith.subf %1, %6 : vector<16x32xf32>
    %8 = arith.mulf %7, %7 : vector<16x32xf32>
    %cst_2 = arith.constant dense<0.000000e+00> : vector<16xf32>
    %9 = vector.multi_reduction <add>, %8, %cst_2 [1] : vector<16x32xf32> to vector<16xf32>
    %10 = vector.shape_cast %9 : vector<16xf32> to vector<16x1xf32>
    %cst_3 = arith.constant 3.200000e+01 : f32
    %11 = vector.broadcast %cst_3 : f32 to vector<16x1xf32>
    %12 = arith.divf %10, %11 : vector<16x1xf32>
    %13 = vector.broadcast %5 : vector<16x1xf32> to vector<16x32xf32>
    %14 = arith.subf %1, %13 : vector<16x32xf32>
    %cst_4 = arith.constant 9.99999974E-6 : f32
    %15 = vector.broadcast %cst_4 : f32 to vector<16x1xf32>
    %16 = arith.addf %12, %15 : vector<16x1xf32>
    %17 = math.rsqrt %16 : vector<16x1xf32>
    %18 = vector.broadcast %17 : vector<16x1xf32> to vector<16x32xf32>
    %19 = arith.mulf %14, %18 : vector<16x32xf32>
    %c0_5 = arith.constant 0 : index
    %c0_6 = arith.constant 0 : index
    %20 = vector.load %arg2[%c0_5, %c0_6] : memref<1x32xf32, #tpu.memory_space<vmem>>, vector<1x32xf32>
    %21 = vector.broadcast %20 : vector<1x32xf32> to vector<16x32xf32>
    %22 = arith.mulf %19, %21 : vector<16x32xf32>
    %c0_7 = arith.constant 0 : index
    %c0_8 = arith.constant 0 : index
    %23 = vector.load %arg3[%c0_7, %c0_8] : memref<1x32xf32, #tpu.memory_space<vmem>>, vector<1x32xf32>
    %24 = vector.broadcast %23 : vector<1x32xf32> to vector<16x32xf32>
    %25 = arith.addf %22, %24 : vector<16x32xf32>
    %26 = arith.truncf %25 : vector<16x32xf32> to vector<16x32xbf16>
    %c0_9 = arith.constant 0 : index
    %c0_10 = arith.constant 0 : index
    %27 = vector.load %arg4[%c0_9, %c0_10] : memref<16x32xbf16, #tpu.memory_space<vmem>>, vector<16x32xbf16>
    tpu.vector_store %arg4[%c0_9, %c0_10], %26 {strides = array<i32>} : memref<16x32xbf16, #tpu.memory_space<vmem>>, vector<16x32xbf16>,
    return
  }
  func.func @transform_0(%arg0: i32) -> (i32, i32) {
    %c0_i32 = arith.constant 0 : i32
    %c0_i32_0 = arith.constant 0 : i32
    return %arg0, %c0_i32 : i32, i32
  }
  func.func @transform_1(%arg0: i32) -> (i32, i32) {
    %c0_i32 = arith.constant 0 : i32
    %c0_i32_0 = arith.constant 0 : i32
    %c0_i32_1 = arith.constant 0 : i32
    return %c0_i32, %c0_i32_0 : i32, i32
  }
  func.func @transform_2(%arg0: i32) -> (i32, i32) {
    %c0_i32 = arith.constant 0 : i32
    %c0_i32_0 = arith.constant 0 : i32
    %c0_i32_1 = arith.constant 0 : i32
    return %c0_i32, %c0_i32_0 : i32, i32
  }
  func.func @transform_3(%arg0: i32) -> (i32, i32) {
    %c0_i32 = arith.constant 0 : i32
    %c0_i32_0 = arith.constant 0 : i32
    return %arg0, %c0_i32 : i32, i32
  }
}

module attributes {stable_mosaic.version = 11 : i64} {
  func.func @_linear_ln_res_kernel(%arg0: i32, %arg1: i32, %arg2: memref<16x32xbf16, #tpu.memory_space<vmem>>, %arg3: memref<32x32xbf16, #tpu.memory_space<vmem>>, %arg4: memref<1x32xbf16, #tpu.memory_space<vmem>>, %arg5: memref<16x32xbf16, #tpu.memory_space<vmem>>, %arg6: memref<1x32xf32, #tpu.memory_space<vmem>>, %arg7: memref<1x32xf32, #tpu.memory_space<vmem>>, %arg8: memref<16x32xbf16, #tpu.memory_space<vmem>>, %arg9: memref<16x32xf32, #tpu.memory_space<vmem>>) attributes {dimension_semantics = [#tpu.dimension_semantics<parallel>, #tpu.dimension_semantics<arbitrary>], iteration_bounds = array<i64: 1, 1>, scalar_prefetch = 0 : i64, scratch_operands = 1 : i64, tpu.core_type = #tpu.core_type<tc>, window_params = [{transform_indices = @transform_0, window_bounds = array<i64: 16, 32>}, {transform_indices = @transform_1, window_bounds = array<i64: 32, 32>}, {pipeline_mode = #tpu.pipeline_mode<synchronous>, transform_indices = @transform_2, window_bounds = array<i64: 1, 32>}, {transform_indices = @transform_3, window_bounds = array<i64: 16, 32>}, {pipeline_mode = #tpu.pipeline_mode<synchronous>, transform_indices = @transform_4, window_bounds = array<i64: 1, 32>}, {pipeline_mode = #tpu.pipeline_mode<synchronous>, transform_indices = @transform_5, window_bounds = array<i64: 1, 32>}, {transform_indices = @transform_6, window_bounds = array<i64: 16, 32>}]} {
    %c0_i32 = arith.constant 0 : i32
    %0 = arith.cmpi eq, %arg1, %c0_i32 : i32
    %1 = arith.extui %0 : i1 to i32
    %c0_i32_0 = arith.constant 0 : i32
    %2 = arith.cmpi ne, %1, %c0_i32_0 : i32
    scf.if %2 {
      %cst_10 = arith.constant 0.000000e+00 : f32
      %12 = vector.broadcast %cst_10 : f32 to vector<16x32xf32>
      %c0_11 = arith.constant 0 : index
      %c0_12 = arith.constant 0 : index
      %13 = vector.load %arg9[%c0_11, %c0_12] : memref<16x32xf32, #tpu.memory_space<vmem>>, vector<16x32xf32>
      tpu.vector_store %arg9[%c0_11, %c0_12], %12 {strides = array<i32>} : memref<16x32xf32, #tpu.memory_space<vmem>>, vector<16x32xf32>,
    } else {
    }
    %c0 = arith.constant 0 : index
    %c0_1 = arith.constant 0 : index
    %3 = vector.load %arg9[%c0, %c0_1] : memref<16x32xf32, #tpu.memory_space<vmem>>, vector<16x32xf32>
    %c0_2 = arith.constant 0 : index
    %c0_3 = arith.constant 0 : index
    %4 = vector.load %arg2[%c0_2, %c0_3] : memref<16x32xbf16, #tpu.memory_space<vmem>>, vector<16x32xbf16>
    %c0_4 = arith.constant 0 : index
    %c0_5 = arith.constant 0 : index
    %5 = vector.load %arg3[%c0_4, %c0_5] : memref<32x32xbf16, #tpu.memory_space<vmem>>, vector<32x32xbf16>
    %cst = arith.constant dense<0.000000e+00> : vector<16x32xf32>
    %6 = tpu.matmul %4, %5, %cst {dimension_numbers = #tpu.dot_dimension_numbers<[1], [0], [0], [1], [0, 0, 1, 1], [], []>} : vector<16x32xbf16>, vector<32x32xbf16>, vector<16x32xf32> -> vector<16x32xf32>
    %7 = arith.addf %3, %6 : vector<16x32xf32>
    %c0_6 = arith.constant 0 : index
    %c0_7 = arith.constant 0 : index
    %8 = vector.load %arg9[%c0_6, %c0_7] : memref<16x32xf32, #tpu.memory_space<vmem>>, vector<16x32xf32>
    tpu.vector_store %arg9[%c0_6, %c0_7], %7 {strides = array<i32>} : memref<16x32xf32, #tpu.memory_space<vmem>>, vector<16x32xf32>,
    %c0_i32_8 = arith.constant 0 : i32
    %9 = arith.cmpi eq, %arg1, %c0_i32_8 : i32
    %10 = arith.extui %9 : i1 to i32
    %c0_i32_9 = arith.constant 0 : i32
    %11 = arith.cmpi ne, %10, %c0_i32_9 : i32
    scf.if %11 {
      %c0_10 = arith.constant 0 : index
      %c0_11 = arith.constant 0 : index
      %12 = vector.load %arg9[%c0_10, %c0_11] : memref<16x32xf32, #tpu.memory_space<vmem>>, vector<16x32xf32>
      %c0_12 = arith.constant 0 : index
      %c0_13 = arith.constant 0 : index
      %13 = vector.load %arg4[%c0_12, %c0_13] : memref<1x32xbf16, #tpu.memory_space<vmem>>, vector<1x32xbf16>
      %14 = arith.extf %13 : vector<1x32xbf16> to vector<1x32xf32>
      %15 = vector.broadcast %14 : vector<1x32xf32> to vector<16x32xf32>
      %16 = arith.addf %12, %15 : vector<16x32xf32>
      %c0_14 = arith.constant 0 : index
      %c0_15 = arith.constant 0 : index
      %17 = vector.load %arg5[%c0_14, %c0_15] : memref<16x32xbf16, #tpu.memory_space<vmem>>, vector<16x32xbf16>
      %18 = arith.extf %17 : vector<16x32xbf16> to vector<16x32xf32>
      %19 = arith.addf %16, %18 : vector<16x32xf32>
      %cst_16 = arith.constant dense<0.000000e+00> : vector<16xf32>
      %20 = vector.multi_reduction <add>, %19, %cst_16 [1] : vector<16x32xf32> to vector<16xf32>
      %21 = vector.shape_cast %20 : vector<16xf32> to vector<16x1xf32>
      %cst_17 = arith.constant 3.200000e+01 : f32
      %22 = vector.broadcast %cst_17 : f32 to vector<16x1xf32>
      %23 = arith.divf %21, %22 : vector<16x1xf32>
      %24 = vector.broadcast %23 : vector<16x1xf32> to vector<16x32xf32>
      %25 = arith.subf %19, %24 : vector<16x32xf32>
      %26 = arith.mulf %25, %25 : vector<16x32xf32>
      %cst_18 = arith.constant dense<0.000000e+00> : vector<16xf32>
      %27 = vector.multi_reduction <add>, %26, %cst_18 [1] : vector<16x32xf32> to vector<16xf32>
      %28 = vector.shape_cast %27 : vector<16xf32> to vector<16x1xf32>
      %cst_19 = arith.constant 3.200000e+01 : f32
      %29 = vector.broadcast %cst_19 : f32 to vector<16x1xf32>
      %30 = arith.divf %28, %29 : vector<16x1xf32>
      %31 = vector.broadcast %23 : vector<16x1xf32> to vector<16x32xf32>
      %32 = arith.subf %19, %31 : vector<16x32xf32>
      %cst_20 = arith.constant 9.99999974E-6 : f32
      %33 = vector.broadcast %cst_20 : f32 to vector<16x1xf32>
      %34 = arith.addf %30, %33 : vector<16x1xf32>
      %35 = math.rsqrt %34 : vector<16x1xf32>
      %36 = vector.broadcast %35 : vector<16x1xf32> to vector<16x32xf32>
      %37 = arith.mulf %32, %36 : vector<16x32xf32>
      %c0_21 = arith.constant 0 : index
      %c0_22 = arith.constant 0 : index
      %38 = vector.load %arg6[%c0_21, %c0_22] : memref<1x32xf32, #tpu.memory_space<vmem>>, vector<1x32xf32>
      %39 = vector.broadcast %38 : vector<1x32xf32> to vector<16x32xf32>
      %40 = arith.mulf %37, %39 : vector<16x32xf32>
      %c0_23 = arith.constant 0 : index
      %c0_24 = arith.constant 0 : index
      %41 = vector.load %arg7[%c0_23, %c0_24] : memref<1x32xf32, #tpu.memory_space<vmem>>, vector<1x32xf32>
      %42 = vector.broadcast %41 : vector<1x32xf32> to vector<16x32xf32>
      %43 = arith.addf %40, %42 : vector<16x32xf32>
      %44 = arith.truncf %43 : vector<16x32xf32> to vector<16x32xbf16>
      %c0_25 = arith.constant 0 : index
      %c0_26 = arith.constant 0 : index
      %45 = vector.load %arg8[%c0_25, %c0_26] : memref<16x32xbf16, #tpu.memory_space<vmem>>, vector<16x32xbf16>
      tpu.vector_store %arg8[%c0_25, %c0_26], %44 {strides = array<i32>} : memref<16x32xbf16, #tpu.memory_space<vmem>>, vector<16x32xbf16>,
    } else {
    }
    return
  }
  func.func @transform_0(%arg0: i32, %arg1: i32) -> (i32, i32) {
    %c0_i32 = arith.constant 0 : i32
    return %arg0, %arg1 : i32, i32
  }
  func.func @transform_1(%arg0: i32, %arg1: i32) -> (i32, i32) {
    %c0_i32 = arith.constant 0 : i32
    %c0_i32_0 = arith.constant 0 : i32
    return %arg1, %c0_i32 : i32, i32
  }
  func.func @transform_2(%arg0: i32, %arg1: i32) -> (i32, i32) {
    %c0_i32 = arith.constant 0 : i32
    %c0_i32_0 = arith.constant 0 : i32
    %c0_i32_1 = arith.constant 0 : i32
    return %c0_i32, %c0_i32_0 : i32, i32
  }
  func.func @transform_3(%arg0: i32, %arg1: i32) -> (i32, i32) {
    %c0_i32 = arith.constant 0 : i32
    %c0_i32_0 = arith.constant 0 : i32
    return %arg0, %c0_i32 : i32, i32
  }
  func.func @transform_4(%arg0: i32, %arg1: i32) -> (i32, i32) {
    %c0_i32 = arith.constant 0 : i32
    %c0_i32_0 = arith.constant 0 : i32
    %c0_i32_1 = arith.constant 0 : i32
    return %c0_i32, %c0_i32_0 : i32, i32
  }
  func.func @transform_5(%arg0: i32, %arg1: i32) -> (i32, i32) {
    %c0_i32 = arith.constant 0 : i32
    %c0_i32_0 = arith.constant 0 : i32
    %c0_i32_1 = arith.constant 0 : i32
    return %c0_i32, %c0_i32_0 : i32, i32
  }
  func.func @transform_6(%arg0: i32, %arg1: i32) -> (i32, i32) {
    %c0_i32 = arith.constant 0 : i32
    %c0_i32_0 = arith.constant 0 : i32
    return %arg0, %c0_i32 : i32, i32
  }
}

module attributes {stable_mosaic.version = 11 : i64} {
  func.func @_linear_kernel(%arg0: i32, %arg1: i32, %arg2: i32, %arg3: memref<16x32xbf16, #tpu.memory_space<vmem>>, %arg4: memref<32x96xbf16, #tpu.memory_space<vmem>>, %arg5: memref<1x96xbf16, #tpu.memory_space<vmem>>, %arg6: memref<16x96xbf16, #tpu.memory_space<vmem>>, %arg7: memref<16x96xf32, #tpu.memory_space<vmem>>) attributes {dimension_semantics = [#tpu.dimension_semantics<parallel>, #tpu.dimension_semantics<parallel>, #tpu.dimension_semantics<arbitrary>], iteration_bounds = array<i64: 1, 1, 1>, scalar_prefetch = 0 : i64, scratch_operands = 1 : i64, tpu.core_type = #tpu.core_type<tc>, window_params = [{transform_indices = @transform_0, window_bounds = array<i64: 16, 32>}, {transform_indices = @transform_1, window_bounds = array<i64: 32, 96>}, {transform_indices = @transform_2, window_bounds = array<i64: 1, 96>}, {transform_indices = @transform_3, window_bounds = array<i64: 16, 96>}]} {
    %c0_i32 = arith.constant 0 : i32
    %0 = arith.cmpi eq, %arg2, %c0_i32 : i32
    %1 = arith.extui %0 : i1 to i32
    %c0_i32_0 = arith.constant 0 : i32
    %2 = arith.cmpi ne, %1, %c0_i32_0 : i32
    scf.if %2 {
      %cst_10 = arith.constant 0.000000e+00 : f32
      %12 = vector.broadcast %cst_10 : f32 to vector<16x96xf32>
      %c0_11 = arith.constant 0 : index
      %c0_12 = arith.constant 0 : index
      %13 = vector.load %arg7[%c0_11, %c0_12] : memref<16x96xf32, #tpu.memory_space<vmem>>, vector<16x96xf32>
      tpu.vector_store %arg7[%c0_11, %c0_12], %12 {strides = array<i32>} : memref<16x96xf32, #tpu.memory_space<vmem>>, vector<16x96xf32>,
    } else {
    }
    %c0 = arith.constant 0 : index
    %c0_1 = arith.constant 0 : index
    %3 = vector.load %arg7[%c0, %c0_1] : memref<16x96xf32, #tpu.memory_space<vmem>>, vector<16x96xf32>
    %c0_2 = arith.constant 0 : index
    %c0_3 = arith.constant 0 : index
    %4 = vector.load %arg3[%c0_2, %c0_3] : memref<16x32xbf16, #tpu.memory_space<vmem>>, vector<16x32xbf16>
    %c0_4 = arith.constant 0 : index
    %c0_5 = arith.constant 0 : index
    %5 = vector.load %arg4[%c0_4, %c0_5] : memref<32x96xbf16, #tpu.memory_space<vmem>>, vector<32x96xbf16>
    %cst = arith.constant dense<0.000000e+00> : vector<16x96xf32>
    %6 = tpu.matmul %4, %5, %cst {dimension_numbers = #tpu.dot_dimension_numbers<[1], [0], [0], [1], [0, 0, 1, 1], [], []>} : vector<16x32xbf16>, vector<32x96xbf16>, vector<16x96xf32> -> vector<16x96xf32>
    %7 = arith.addf %3, %6 : vector<16x96xf32>
    %c0_6 = arith.constant 0 : index
    %c0_7 = arith.constant 0 : index
    %8 = vector.load %arg7[%c0_6, %c0_7] : memref<16x96xf32, #tpu.memory_space<vmem>>, vector<16x96xf32>
    tpu.vector_store %arg7[%c0_6, %c0_7], %7 {strides = array<i32>} : memref<16x96xf32, #tpu.memory_space<vmem>>, vector<16x96xf32>,
    %c0_i32_8 = arith.constant 0 : i32
    %9 = arith.cmpi eq, %arg2, %c0_i32_8 : i32
    %10 = arith.extui %9 : i1 to i32
    %c0_i32_9 = arith.constant 0 : i32
    %11 = arith.cmpi ne, %10, %c0_i32_9 : i32
    scf.if %11 {
      %c0_10 = arith.constant 0 : index
      %c0_11 = arith.constant 0 : index
      %12 = vector.load %arg7[%c0_10, %c0_11] : memref<16x96xf32, #tpu.memory_space<vmem>>, vector<16x96xf32>
      %c0_12 = arith.constant 0 : index
      %c0_13 = arith.constant 0 : index
      %13 = vector.load %arg5[%c0_12, %c0_13] : memref<1x96xbf16, #tpu.memory_space<vmem>>, vector<1x96xbf16>
      %14 = arith.extf %13 : vector<1x96xbf16> to vector<1x96xf32>
      %15 = vector.broadcast %14 : vector<1x96xf32> to vector<16x96xf32>
      %16 = arith.addf %12, %15 : vector<16x96xf32>
      %17 = arith.truncf %16 : vector<16x96xf32> to vector<16x96xbf16>
      %c0_14 = arith.constant 0 : index
      %c0_15 = arith.constant 0 : index
      %18 = vector.load %arg6[%c0_14, %c0_15] : memref<16x96xbf16, #tpu.memory_space<vmem>>, vector<16x96xbf16>
      tpu.vector_store %arg6[%c0_14, %c0_15], %17 {strides = array<i32>} : memref<16x96xbf16, #tpu.memory_space<vmem>>, vector<16x96xbf16>,
    } else {
    }
    return
  }
  func.func @transform_0(%arg0: i32, %arg1: i32, %arg2: i32) -> (i32, i32) {
    %c0_i32 = arith.constant 0 : i32
    return %arg0, %arg2 : i32, i32
  }
  func.func @transform_1(%arg0: i32, %arg1: i32, %arg2: i32) -> (i32, i32) {
    %c0_i32 = arith.constant 0 : i32
    return %arg2, %arg1 : i32, i32
  }
  func.func @transform_2(%arg0: i32, %arg1: i32, %arg2: i32) -> (i32, i32) {
    %c0_i32 = arith.constant 0 : i32
    %c0_i32_0 = arith.constant 0 : i32
    return %c0_i32, %arg1 : i32, i32
  }
  func.func @transform_3(%arg0: i32, %arg1: i32, %arg2: i32) -> (i32, i32) {
    %c0_i32 = arith.constant 0 : i32
    return %arg0, %arg1 : i32, i32
  }
}

module attributes {stable_mosaic.version = 11 : i64} {
  func.func @_attention_kernel(%arg0: i32, %arg1: i32, %arg2: memref<1x8x96xbf16, #tpu.memory_space<vmem>>, %arg3: memref<1x1x8xf32, #tpu.memory_space<vmem>>, %arg4: memref<1x8x32xbf16, #tpu.memory_space<vmem>>, %arg5: memref<32x8xbf16, #tpu.memory_space<vmem>>) attributes {dimension_semantics = [#tpu.dimension_semantics<parallel>, #tpu.dimension_semantics<arbitrary>], iteration_bounds = array<i64: 2, 1>, scalar_prefetch = 0 : i64, scratch_operands = 1 : i64, tpu.core_type = #tpu.core_type<tc>, window_params = [{transform_indices = @transform_0, window_bounds = array<i64: 1, 8, 96>}, {transform_indices = @transform_1, window_bounds = array<i64: 1, 1, 8>}, {transform_indices = @transform_2, window_bounds = array<i64: 1, 8, 32>}]} {
    %c8_i32 = arith.constant 8 : i32
    %0 = arith.muli %arg1, %c8_i32 : i32
    %1 = tpu.assume_multiple %0, 8 : i32
    %c0_i32 = arith.constant 0 : i32
    %2 = arith.cmpi eq, %arg1, %c0_i32 : i32
    %3 = arith.extui %2 : i1 to i32
    %c0_i32_0 = arith.constant 0 : i32
    %4 = arith.cmpi ne, %3, %c0_i32_0 : i32
    scf.if %4 {
      %c0_28 = arith.constant 0 : index
      %c0_29 = arith.constant 0 : index
      %c32 = arith.constant 32 : index
      %61 = vector.load %arg2[%c0_28, %c0_29, %c32] : memref<1x8x96xbf16, #tpu.memory_space<vmem>>, vector<1x8x32xbf16>
      %62 = vector.shape_cast %61 : vector<1x8x32xbf16> to vector<8x32xbf16>
      %63 = tpu.transpose %62, [1, 0] : vector<8x32xbf16> -> vector<32x8xbf16>
      %c0_30 = arith.constant 0 : index
      %c0_31 = arith.constant 0 : index
      %64 = vector.load %arg5[%c0_30, %c0_31] : memref<32x8xbf16, #tpu.memory_space<vmem>>, vector<32x8xbf16>
      tpu.vector_store %arg5[%c0_30, %c0_31], %63 {strides = array<i32>} : memref<32x8xbf16, #tpu.memory_space<vmem>>, vector<32x8xbf16>,
    } else {
    }
    %c0 = arith.constant 0 : index
    %c0_1 = arith.constant 0 : index
    %c0_2 = arith.constant 0 : index
    %5 = vector.load %arg3[%c0, %c0_1, %c0_2] : memref<1x1x8xf32, #tpu.memory_space<vmem>>, vector<1x1x8xf32>
    %6 = vector.shape_cast %5 : vector<1x1x8xf32> to vector<1x8xf32>
    %cst = arith.constant 1.000000e+00 : f32
    %7 = vector.broadcast %cst : f32 to vector<1x8xf32>
    %8 = arith.subf %6, %7 : vector<1x8xf32>
    %cst_3 = arith.constant 1.000000e+09 : f32
    %9 = vector.broadcast %cst_3 : f32 to vector<1x8xf32>
    %10 = arith.mulf %8, %9 : vector<1x8xf32>
    %c0_4 = arith.constant 0 : index
    %11 = arith.index_cast %1 : i32 to index
    %c0_5 = arith.constant 0 : index
    %12 = vector.load %arg2[%c0_4, %11, %c0_5] : memref<1x8x96xbf16, #tpu.memory_space<vmem>>, vector<1x8x16xbf16>
    %13 = vector.shape_cast %12 : vector<1x8x16xbf16> to vector<8x16xbf16>
    %cst_6 = arith.constant 2.500000e-01 : bf16
    %14 = vector.broadcast %cst_6 : bf16 to vector<8x16xbf16>
    %15 = arith.mulf %13, %14 : vector<8x16xbf16>
    %c0_7 = arith.constant 0 : index
    %c0_8 = arith.constant 0 : index
    %16 = vector.load %arg5[%c0_7, %c0_8] : memref<32x8xbf16, #tpu.memory_space<vmem>>, vector<16x8xbf16>
    %c0_9 = arith.constant 0 : index
    %c0_10 = arith.constant 0 : index
    %c64 = arith.constant 64 : index
    %17 = vector.load %arg2[%c0_9, %c0_10, %c64] : memref<1x8x96xbf16, #tpu.memory_space<vmem>>, vector<1x8x16xbf16>
    %18 = vector.shape_cast %17 : vector<1x8x16xbf16> to vector<8x16xbf16>
    %cst_11 = arith.constant dense<0.000000e+00> : vector<8x8xf32>
    %19 = tpu.matmul %15, %16, %cst_11 {dimension_numbers = #tpu.dot_dimension_numbers<[1], [0], [0], [1], [0, 0, 1, 1], [], []>} : vector<8x16xbf16>, vector<16x8xbf16>, vector<8x8xf32> -> vector<8x8xf32>
    %20 = vector.broadcast %10 : vector<1x8xf32> to vector<8x8xf32>
    %21 = arith.addf %19, %20 : vector<8x8xf32>
    %cst_12 = arith.constant dense<0xFF800000> : vector<8xf32>
    %22 = vector.multi_reduction <maximumf>, %21, %cst_12 [1] : vector<8x8xf32> to vector<8xf32>
    %23 = vector.shape_cast %22 : vector<8xf32> to vector<8x1xf32>
    %24 = vector.broadcast %23 : vector<8x1xf32> to vector<8x8xf32>
    %25 = arith.subf %21, %24 : vector<8x8xf32>
    %26 = math.exp %25 : vector<8x8xf32>
    %cst_13 = arith.constant dense<0.000000e+00> : vector<8xf32>
    %27 = vector.multi_reduction <add>, %26, %cst_13 [1] : vector<8x8xf32> to vector<8xf32>
    %28 = vector.shape_cast %27 : vector<8xf32> to vector<8x1xf32>
    %29 = arith.truncf %26 : vector<8x8xf32> to vector<8x8xbf16>
    %cst_14 = arith.constant dense<0.000000e+00> : vector<8x16xf32>
    %30 = tpu.matmul %29, %18, %cst_14 {dimension_numbers = #tpu.dot_dimension_numbers<[1], [0], [0], [1], [0, 0, 1, 1], [], []>} : vector<8x8xbf16>, vector<8x16xbf16>, vector<8x16xf32> -> vector<8x16xf32>
    %31 = vector.broadcast %28 : vector<8x1xf32> to vector<8x16xf32>
    %32 = arith.divf %30, %31 : vector<8x16xf32>
    %33 = arith.truncf %32 : vector<8x16xf32> to vector<8x16xbf16>
    %c0_15 = arith.constant 0 : index
    %34 = arith.index_cast %1 : i32 to index
    %c16 = arith.constant 16 : index
    %35 = vector.load %arg2[%c0_15, %34, %c16] : memref<1x8x96xbf16, #tpu.memory_space<vmem>>, vector<1x8x16xbf16>
    %36 = vector.shape_cast %35 : vector<1x8x16xbf16> to vector<8x16xbf16>
    %cst_16 = arith.constant 2.500000e-01 : bf16
    %37 = vector.broadcast %cst_16 : bf16 to vector<8x16xbf16>
    %38 = arith.mulf %36, %37 : vector<8x16xbf16>
    %c16_17 = arith.constant 16 : index
    %c0_18 = arith.constant 0 : index
    %39 = vector.load %arg5[%c16_17, %c0_18] : memref<32x8xbf16, #tpu.memory_space<vmem>>, vector<16x8xbf16>
    %c0_19 = arith.constant 0 : index
    %c0_20 = arith.constant 0 : index
    %c80 = arith.constant 80 : index
    %40 = vector.load %arg2[%c0_19, %c0_20, %c80] : memref<1x8x96xbf16, #tpu.memory_space<vmem>>, vector<1x8x16xbf16>
    %41 = vector.shape_cast %40 : vector<1x8x16xbf16> to vector<8x16xbf16>
    %cst_21 = arith.constant dense<0.000000e+00> : vector<8x8xf32>
    %42 = tpu.matmul %38, %39, %cst_21 {dimension_numbers = #tpu.dot_dimension_numbers<[1], [0], [0], [1], [0, 0, 1, 1], [], []>} : vector<8x16xbf16>, vector<16x8xbf16>, vector<8x8xf32> -> vector<8x8xf32>
    %43 = vector.broadcast %10 : vector<1x8xf32> to vector<8x8xf32>
    %44 = arith.addf %42, %43 : vector<8x8xf32>
    %cst_22 = arith.constant dense<0xFF800000> : vector<8xf32>
    %45 = vector.multi_reduction <maximumf>, %44, %cst_22 [1] : vector<8x8xf32> to vector<8xf32>
    %46 = vector.shape_cast %45 : vector<8xf32> to vector<8x1xf32>
    %47 = vector.broadcast %46 : vector<8x1xf32> to vector<8x8xf32>
    %48 = arith.subf %44, %47 : vector<8x8xf32>
    %49 = math.exp %48 : vector<8x8xf32>
    %cst_23 = arith.constant dense<0.000000e+00> : vector<8xf32>
    %50 = vector.multi_reduction <add>, %49, %cst_23 [1] : vector<8x8xf32> to vector<8xf32>
    %51 = vector.shape_cast %50 : vector<8xf32> to vector<8x1xf32>
    %52 = arith.truncf %49 : vector<8x8xf32> to vector<8x8xbf16>
    %cst_24 = arith.constant dense<0.000000e+00> : vector<8x16xf32>
    %53 = tpu.matmul %52, %41, %cst_24 {dimension_numbers = #tpu.dot_dimension_numbers<[1], [0], [0], [1], [0, 0, 1, 1], [], []>} : vector<8x8xbf16>, vector<8x16xbf16>, vector<8x16xf32> -> vector<8x16xf32>
    %54 = vector.broadcast %51 : vector<8x1xf32> to vector<8x16xf32>
    %55 = arith.divf %53, %54 : vector<8x16xf32>
    %56 = arith.truncf %55 : vector<8x16xf32> to vector<8x16xbf16>
    %57 = tpu.concatenate %33, %56 in 1 : vector<8x16xbf16>, vector<8x16xbf16> -> vector<8x32xbf16>
    %c0_25 = arith.constant 0 : index
    %c0_26 = arith.constant 0 : index
    %c0_27 = arith.constant 0 : index
    %58 = vector.load %arg4[%c0_25, %c0_26, %c0_27] : memref<1x8x32xbf16, #tpu.memory_space<vmem>>, vector<1x8x32xbf16>
    %59 = vector.shape_cast %58 : vector<1x8x32xbf16> to vector<8x32xbf16>
    %60 = vector.shape_cast %57 : vector<8x32xbf16> to vector<1x8x32xbf16>
    tpu.vector_store %arg4[%c0_25, %c0_26, %c0_27], %60 {strides = array<i32>} : memref<1x8x32xbf16, #tpu.memory_space<vmem>>, vector<1x8x32xbf16>,
    return
  }
  func.func @transform_0(%arg0: i32, %arg1: i32) -> (i32, i32, i32) {
    %c0_i32 = arith.constant 0 : i32
    %c0_i32_0 = arith.constant 0 : i32
    %c0_i32_1 = arith.constant 0 : i32
    return %arg0, %c0_i32, %c0_i32_0 : i32, i32, i32
  }
  func.func @transform_1(%arg0: i32, %arg1: i32) -> (i32, i32, i32) {
    %c0_i32 = arith.constant 0 : i32
    %c0_i32_0 = arith.constant 0 : i32
    %c0_i32_1 = arith.constant 0 : i32
    return %arg0, %c0_i32, %c0_i32_0 : i32, i32, i32
  }
  func.func @transform_2(%arg0: i32, %arg1: i32) -> (i32, i32, i32) {
    %c0_i32 = arith.constant 0 : i32
    %c0_i32_0 = arith.constant 0 : i32
    return %arg0, %arg1, %c0_i32 : i32, i32, i32
  }
}

module attributes {stable_mosaic.version = 11 : i64} {
  func.func @_linear_kernel(%arg0: i32, %arg1: i32, %arg2: i32, %arg3: memref<16x32xbf16, #tpu.memory_space<vmem>>, %arg4: memref<32x64xbf16, #tpu.memory_space<vmem>>, %arg5: memref<1x64xbf16, #tpu.memory_space<vmem>>, %arg6: memref<16x64xbf16, #tpu.memory_space<vmem>>, %arg7: memref<16x64xf32, #tpu.memory_space<vmem>>) attributes {dimension_semantics = [#tpu.dimension_semantics<parallel>, #tpu.dimension_semantics<parallel>, #tpu.dimension_semantics<arbitrary>], iteration_bounds = array<i64: 1, 1, 1>, scalar_prefetch = 0 : i64, scratch_operands = 1 : i64, tpu.core_type = #tpu.core_type<tc>, window_params = [{transform_indices = @transform_0, window_bounds = array<i64: 16, 32>}, {transform_indices = @transform_1, window_bounds = array<i64: 32, 64>}, {transform_indices = @transform_2, window_bounds = array<i64: 1, 64>}, {transform_indices = @transform_3, window_bounds = array<i64: 16, 64>}]} {
    %c0_i32 = arith.constant 0 : i32
    %0 = arith.cmpi eq, %arg2, %c0_i32 : i32
    %1 = arith.extui %0 : i1 to i32
    %c0_i32_0 = arith.constant 0 : i32
    %2 = arith.cmpi ne, %1, %c0_i32_0 : i32
    scf.if %2 {
      %cst_10 = arith.constant 0.000000e+00 : f32
      %12 = vector.broadcast %cst_10 : f32 to vector<16x64xf32>
      %c0_11 = arith.constant 0 : index
      %c0_12 = arith.constant 0 : index
      %13 = vector.load %arg7[%c0_11, %c0_12] : memref<16x64xf32, #tpu.memory_space<vmem>>, vector<16x64xf32>
      tpu.vector_store %arg7[%c0_11, %c0_12], %12 {strides = array<i32>} : memref<16x64xf32, #tpu.memory_space<vmem>>, vector<16x64xf32>,
    } else {
    }
    %c0 = arith.constant 0 : index
    %c0_1 = arith.constant 0 : index
    %3 = vector.load %arg7[%c0, %c0_1] : memref<16x64xf32, #tpu.memory_space<vmem>>, vector<16x64xf32>
    %c0_2 = arith.constant 0 : index
    %c0_3 = arith.constant 0 : index
    %4 = vector.load %arg3[%c0_2, %c0_3] : memref<16x32xbf16, #tpu.memory_space<vmem>>, vector<16x32xbf16>
    %c0_4 = arith.constant 0 : index
    %c0_5 = arith.constant 0 : index
    %5 = vector.load %arg4[%c0_4, %c0_5] : memref<32x64xbf16, #tpu.memory_space<vmem>>, vector<32x64xbf16>
    %cst = arith.constant dense<0.000000e+00> : vector<16x64xf32>
    %6 = tpu.matmul %4, %5, %cst {dimension_numbers = #tpu.dot_dimension_numbers<[1], [0], [0], [1], [0, 0, 1, 1], [], []>} : vector<16x32xbf16>, vector<32x64xbf16>, vector<16x64xf32> -> vector<16x64xf32>
    %7 = arith.addf %3, %6 : vector<16x64xf32>
    %c0_6 = arith.constant 0 : index
    %c0_7 = arith.constant 0 : index
    %8 = vector.load %arg7[%c0_6, %c0_7] : memref<16x64xf32, #tpu.memory_space<vmem>>, vector<16x64xf32>
    tpu.vector_store %arg7[%c0_6, %c0_7], %7 {strides = array<i32>} : memref<16x64xf32, #tpu.memory_space<vmem>>, vector<16x64xf32>,
    %c0_i32_8 = arith.constant 0 : i32
    %9 = arith.cmpi eq, %arg2, %c0_i32_8 : i32
    %10 = arith.extui %9 : i1 to i32
    %c0_i32_9 = arith.constant 0 : i32
    %11 = arith.cmpi ne, %10, %c0_i32_9 : i32
    scf.if %11 {
      %c0_10 = arith.constant 0 : index
      %c0_11 = arith.constant 0 : index
      %12 = vector.load %arg7[%c0_10, %c0_11] : memref<16x64xf32, #tpu.memory_space<vmem>>, vector<16x64xf32>
      %c0_12 = arith.constant 0 : index
      %c0_13 = arith.constant 0 : index
      %13 = vector.load %arg5[%c0_12, %c0_13] : memref<1x64xbf16, #tpu.memory_space<vmem>>, vector<1x64xbf16>
      %14 = arith.extf %13 : vector<1x64xbf16> to vector<1x64xf32>
      %15 = vector.broadcast %14 : vector<1x64xf32> to vector<16x64xf32>
      %16 = arith.addf %12, %15 : vector<16x64xf32>
      %17 = arith.mulf %16, %16 : vector<16x64xf32>
      %18 = arith.mulf %16, %17 : vector<16x64xf32>
      %cst_14 = arith.constant 4.471500e-02 : f32
      %19 = vector.broadcast %cst_14 : f32 to vector<16x64xf32>
      %20 = arith.mulf %19, %18 : vector<16x64xf32>
      %21 = arith.addf %16, %20 : vector<16x64xf32>
      %cst_15 = arith.constant 0.797884583 : f32
      %22 = vector.broadcast %cst_15 : f32 to vector<16x64xf32>
      %23 = arith.mulf %22, %21 : vector<16x64xf32>
      %24 = math.tanh %23 : vector<16x64xf32>
      %cst_16 = arith.constant 1.000000e+00 : f32
      %25 = vector.broadcast %cst_16 : f32 to vector<16x64xf32>
      %26 = arith.addf %25, %24 : vector<16x64xf32>
      %cst_17 = arith.constant 5.000000e-01 : f32
      %27 = vector.broadcast %cst_17 : f32 to vector<16x64xf32>
      %28 = arith.mulf %27, %26 : vector<16x64xf32>
      %29 = arith.mulf %16, %28 : vector<16x64xf32>
      %30 = arith.truncf %29 : vector<16x64xf32> to vector<16x64xbf16>
      %c0_18 = arith.constant 0 : index
      %c0_19 = arith.constant 0 : index
      %31 = vector.load %arg6[%c0_18, %c0_19] : memref<16x64xbf16, #tpu.memory_space<vmem>>, vector<16x64xbf16>
      tpu.vector_store %arg6[%c0_18, %c0_19], %30 {strides = array<i32>} : memref<16x64xbf16, #tpu.memory_space<vmem>>, vector<16x64xbf16>,
    } else {
    }
    return
  }
  func.func @transform_0(%arg0: i32, %arg1: i32, %arg2: i32) -> (i32, i32) {
    %c0_i32 = arith.constant 0 : i32
    return %arg0, %arg2 : i32, i32
  }
  func.func @transform_1(%arg0: i32, %arg1: i32, %arg2: i32) -> (i32, i32) {
    %c0_i32 = arith.constant 0 : i32
    return %arg2, %arg1 : i32, i32
  }
  func.func @transform_2(%arg0: i32, %arg1: i32, %arg2: i32) -> (i32, i32) {
    %c0_i32 = arith.constant 0 : i32
    %c0_i32_0 = arith.constant 0 : i32
    return %c0_i32, %arg1 : i32, i32
  }
  func.func @transform_3(%arg0: i32, %arg1: i32, %arg2: i32) -> (i32, i32) {
    %c0_i32 = arith.constant 0 : i32
    return %arg0, %arg1 : i32, i32
  }
}

module attributes {stable_mosaic.version = 11 : i64} {
  func.func @_linear_ln_res_kernel(%arg0: i32, %arg1: i32, %arg2: memref<16x64xbf16, #tpu.memory_space<vmem>>, %arg3: memref<64x32xbf16, #tpu.memory_space<vmem>>, %arg4: memref<1x32xbf16, #tpu.memory_space<vmem>>, %arg5: memref<16x32xbf16, #tpu.memory_space<vmem>>, %arg6: memref<1x32xf32, #tpu.memory_space<vmem>>, %arg7: memref<1x32xf32, #tpu.memory_space<vmem>>, %arg8: memref<16x32xbf16, #tpu.memory_space<vmem>>, %arg9: memref<16x32xf32, #tpu.memory_space<vmem>>) attributes {dimension_semantics = [#tpu.dimension_semantics<parallel>, #tpu.dimension_semantics<arbitrary>], iteration_bounds = array<i64: 1, 1>, scalar_prefetch = 0 : i64, scratch_operands = 1 : i64, tpu.core_type = #tpu.core_type<tc>, window_params = [{transform_indices = @transform_0, window_bounds = array<i64: 16, 64>}, {transform_indices = @transform_1, window_bounds = array<i64: 64, 32>}, {pipeline_mode = #tpu.pipeline_mode<synchronous>, transform_indices = @transform_2, window_bounds = array<i64: 1, 32>}, {transform_indices = @transform_3, window_bounds = array<i64: 16, 32>}, {pipeline_mode = #tpu.pipeline_mode<synchronous>, transform_indices = @transform_4, window_bounds = array<i64: 1, 32>}, {pipeline_mode = #tpu.pipeline_mode<synchronous>, transform_indices = @transform_5, window_bounds = array<i64: 1, 32>}, {transform_indices = @transform_6, window_bounds = array<i64: 16, 32>}]} {
    %c0_i32 = arith.constant 0 : i32
    %0 = arith.cmpi eq, %arg1, %c0_i32 : i32
    %1 = arith.extui %0 : i1 to i32
    %c0_i32_0 = arith.constant 0 : i32
    %2 = arith.cmpi ne, %1, %c0_i32_0 : i32
    scf.if %2 {
      %cst_10 = arith.constant 0.000000e+00 : f32
      %12 = vector.broadcast %cst_10 : f32 to vector<16x32xf32>
      %c0_11 = arith.constant 0 : index
      %c0_12 = arith.constant 0 : index
      %13 = vector.load %arg9[%c0_11, %c0_12] : memref<16x32xf32, #tpu.memory_space<vmem>>, vector<16x32xf32>
      tpu.vector_store %arg9[%c0_11, %c0_12], %12 {strides = array<i32>} : memref<16x32xf32, #tpu.memory_space<vmem>>, vector<16x32xf32>,
    } else {
    }
    %c0 = arith.constant 0 : index
    %c0_1 = arith.constant 0 : index
    %3 = vector.load %arg9[%c0, %c0_1] : memref<16x32xf32, #tpu.memory_space<vmem>>, vector<16x32xf32>
    %c0_2 = arith.constant 0 : index
    %c0_3 = arith.constant 0 : index
    %4 = vector.load %arg2[%c0_2, %c0_3] : memref<16x64xbf16, #tpu.memory_space<vmem>>, vector<16x64xbf16>
    %c0_4 = arith.constant 0 : index
    %c0_5 = arith.constant 0 : index
    %5 = vector.load %arg3[%c0_4, %c0_5] : memref<64x32xbf16, #tpu.memory_space<vmem>>, vector<64x32xbf16>
    %cst = arith.constant dense<0.000000e+00> : vector<16x32xf32>
    %6 = tpu.matmul %4, %5, %cst {dimension_numbers = #tpu.dot_dimension_numbers<[1], [0], [0], [1], [0, 0, 1, 1], [], []>} : vector<16x64xbf16>, vector<64x32xbf16>, vector<16x32xf32> -> vector<16x32xf32>
    %7 = arith.addf %3, %6 : vector<16x32xf32>
    %c0_6 = arith.constant 0 : index
    %c0_7 = arith.constant 0 : index
    %8 = vector.load %arg9[%c0_6, %c0_7] : memref<16x32xf32, #tpu.memory_space<vmem>>, vector<16x32xf32>
    tpu.vector_store %arg9[%c0_6, %c0_7], %7 {strides = array<i32>} : memref<16x32xf32, #tpu.memory_space<vmem>>, vector<16x32xf32>,
    %c0_i32_8 = arith.constant 0 : i32
    %9 = arith.cmpi eq, %arg1, %c0_i32_8 : i32
    %10 = arith.extui %9 : i1 to i32
    %c0_i32_9 = arith.constant 0 : i32
    %11 = arith.cmpi ne, %10, %c0_i32_9 : i32
    scf.if %11 {
      %c0_10 = arith.constant 0 : index
      %c0_11 = arith.constant 0 : index
      %12 = vector.load %arg9[%c0_10, %c0_11] : memref<16x32xf32, #tpu.memory_space<vmem>>, vector<16x32xf32>
      %c0_12 = arith.constant 0 : index
      %c0_13 = arith.constant 0 : index
      %13 = vector.load %arg4[%c0_12, %c0_13] : memref<1x32xbf16, #tpu.memory_space<vmem>>, vector<1x32xbf16>
      %14 = arith.extf %13 : vector<1x32xbf16> to vector<1x32xf32>
      %15 = vector.broadcast %14 : vector<1x32xf32> to vector<16x32xf32>
      %16 = arith.addf %12, %15 : vector<16x32xf32>
      %c0_14 = arith.constant 0 : index
      %c0_15 = arith.constant 0 : index
      %17 = vector.load %arg5[%c0_14, %c0_15] : memref<16x32xbf16, #tpu.memory_space<vmem>>, vector<16x32xbf16>
      %18 = arith.extf %17 : vector<16x32xbf16> to vector<16x32xf32>
      %19 = arith.addf %16, %18 : vector<16x32xf32>
      %cst_16 = arith.constant dense<0.000000e+00> : vector<16xf32>
      %20 = vector.multi_reduction <add>, %19, %cst_16 [1] : vector<16x32xf32> to vector<16xf32>
      %21 = vector.shape_cast %20 : vector<16xf32> to vector<16x1xf32>
      %cst_17 = arith.constant 3.200000e+01 : f32
      %22 = vector.broadcast %cst_17 : f32 to vector<16x1xf32>
      %23 = arith.divf %21, %22 : vector<16x1xf32>
      %24 = vector.broadcast %23 : vector<16x1xf32> to vector<16x32xf32>
      %25 = arith.subf %19, %24 : vector<16x32xf32>
      %26 = arith.mulf %25, %25 : vector<16x32xf32>
      %cst_18 = arith.constant dense<0.000000e+00> : vector<16xf32>
      %27 = vector.multi_reduction <add>, %26, %cst_18 [1] : vector<16x32xf32> to vector<16xf32>
      %28 = vector.shape_cast %27 : vector<16xf32> to vector<16x1xf32>
      %cst_19 = arith.constant 3.200000e+01 : f32
      %29 = vector.broadcast %cst_19 : f32 to vector<16x1xf32>
      %30 = arith.divf %28, %29 : vector<16x1xf32>
      %31 = vector.broadcast %23 : vector<16x1xf32> to vector<16x32xf32>
      %32 = arith.subf %19, %31 : vector<16x32xf32>
      %cst_20 = arith.constant 9.99999974E-6 : f32
      %33 = vector.broadcast %cst_20 : f32 to vector<16x1xf32>
      %34 = arith.addf %30, %33 : vector<16x1xf32>
      %35 = math.rsqrt %34 : vector<16x1xf32>
      %36 = vector.broadcast %35 : vector<16x1xf32> to vector<16x32xf32>
      %37 = arith.mulf %32, %36 : vector<16x32xf32>
      %c0_21 = arith.constant 0 : index
      %c0_22 = arith.constant 0 : index
      %38 = vector.load %arg6[%c0_21, %c0_22] : memref<1x32xf32, #tpu.memory_space<vmem>>, vector<1x32xf32>
      %39 = vector.broadcast %38 : vector<1x32xf32> to vector<16x32xf32>
      %40 = arith.mulf %37, %39 : vector<16x32xf32>
      %c0_23 = arith.constant 0 : index
      %c0_24 = arith.constant 0 : index
      %41 = vector.load %arg7[%c0_23, %c0_24] : memref<1x32xf32, #tpu.memory_space<vmem>>, vector<1x32xf32>
      %42 = vector.broadcast %41 : vector<1x32xf32> to vector<16x32xf32>
      %43 = arith.addf %40, %42 : vector<16x32xf32>
      %44 = arith.truncf %43 : vector<16x32xf32> to vector<16x32xbf16>
      %c0_25 = arith.constant 0 : index
      %c0_26 = arith.constant 0 : index
      %45 = vector.load %arg8[%c0_25, %c0_26] : memref<16x32xbf16, #tpu.memory_space<vmem>>, vector<16x32xbf16>
      tpu.vector_store %arg8[%c0_25, %c0_26], %44 {strides = array<i32>} : memref<16x32xbf16, #tpu.memory_space<vmem>>, vector<16x32xbf16>,
    } else {
    }
    return
  }
  func.func @transform_0(%arg0: i32, %arg1: i32) -> (i32, i32) {
    %c0_i32 = arith.constant 0 : i32
    return %arg0, %arg1 : i32, i32
  }
  func.func @transform_1(%arg0: i32, %arg1: i32) -> (i32, i32) {
    %c0_i32 = arith.constant 0 : i32
    %c0_i32_0 = arith.constant 0 : i32
    return %arg1, %c0_i32 : i32, i32
  }
  func.func @transform_2(%arg0: i32, %arg1: i32) -> (i32, i32) {
    %c0_i32 = arith.constant 0 : i32
    %c0_i32_0 = arith.constant 0 : i32
    %c0_i32_1 = arith.constant 0 : i32
    return %c0_i32, %c0_i32_0 : i32, i32
  }
  func.func @transform_3(%arg0: i32, %arg1: i32) -> (i32, i32) {
    %c0_i32 = arith.constant 0 : i32
    %c0_i32_0 = arith.constant 0 : i32
    return %arg0, %c0_i32 : i32, i32
  }
  func.func @transform_4(%arg0: i32, %arg1: i32) -> (i32, i32) {
    %c0_i32 = arith.constant 0 : i32
    %c0_i32_0 = arith.constant 0 : i32
    %c0_i32_1 = arith.constant 0 : i32
    return %c0_i32, %c0_i32_0 : i32, i32
  }
  func.func @transform_5(%arg0: i32, %arg1: i32) -> (i32, i32) {
    %c0_i32 = arith.constant 0 : i32
    %c0_i32_0 = arith.constant 0 : i32
    %c0_i32_1 = arith.constant 0 : i32
    return %c0_i32, %c0_i32_0 : i32, i32
  }
  func.func @transform_6(%arg0: i32, %arg1: i32) -> (i32, i32) {
    %c0_i32 = arith.constant 0 : i32
    %c0_i32_0 = arith.constant 0 : i32
    return %arg0, %c0_i32 : i32, i32
  }
}

module attributes {stable_mosaic.version = 11 : i64} {
  func.func @_mlm_tail_kernel(%arg0: i32, %arg1: memref<2x32xbf16, #tpu.memory_space<vmem>>, %arg2: memref<32x32xbf16, #tpu.memory_space<vmem>>, %arg3: memref<1x32xbf16, #tpu.memory_space<vmem>>, %arg4: memref<1x32xf32, #tpu.memory_space<vmem>>, %arg5: memref<1x32xf32, #tpu.memory_space<vmem>>, %arg6: memref<32x128xbf16, #tpu.memory_space<vmem>>, %arg7: memref<1x128xbf16, #tpu.memory_space<vmem>>, %arg8: memref<2x128xf32, #tpu.memory_space<vmem>>) attributes {dimension_semantics = [#tpu.dimension_semantics<arbitrary>], iteration_bounds = array<i64: 1>, scalar_prefetch = 0 : i64, scratch_operands = 0 : i64, tpu.core_type = #tpu.core_type<tc>, window_params = [{pipeline_mode = #tpu.pipeline_mode<synchronous>, transform_indices = @transform_0, window_bounds = array<i64: 2, 32>}, {pipeline_mode = #tpu.pipeline_mode<synchronous>, transform_indices = @transform_1, window_bounds = array<i64: 32, 32>}, {pipeline_mode = #tpu.pipeline_mode<synchronous>, transform_indices = @transform_2, window_bounds = array<i64: 1, 32>}, {pipeline_mode = #tpu.pipeline_mode<synchronous>, transform_indices = @transform_3, window_bounds = array<i64: 1, 32>}, {pipeline_mode = #tpu.pipeline_mode<synchronous>, transform_indices = @transform_4, window_bounds = array<i64: 1, 32>}, {pipeline_mode = #tpu.pipeline_mode<synchronous>, transform_indices = @transform_5, window_bounds = array<i64: 32, 128>}, {pipeline_mode = #tpu.pipeline_mode<synchronous>, transform_indices = @transform_6, window_bounds = array<i64: 1, 128>}, {pipeline_mode = #tpu.pipeline_mode<synchronous>, transform_indices = @transform_7, window_bounds = array<i64: 2, 128>}]} {
    %c0 = arith.constant 0 : index
    %c0_0 = arith.constant 0 : index
    %0 = vector.load %arg1[%c0, %c0_0] : memref<2x32xbf16, #tpu.memory_space<vmem>>, vector<2x32xbf16>
    %c0_1 = arith.constant 0 : index
    %c0_2 = arith.constant 0 : index
    %1 = vector.load %arg2[%c0_1, %c0_2] : memref<32x32xbf16, #tpu.memory_space<vmem>>, vector<32x32xbf16>
    %cst = arith.constant dense<0.000000e+00> : vector<2x32xf32>
    %2 = tpu.matmul %0, %1, %cst {dimension_numbers = #tpu.dot_dimension_numbers<[1], [0], [0], [1], [0, 0, 1, 1], [], []>} : vector<2x32xbf16>, vector<32x32xbf16>, vector<2x32xf32> -> vector<2x32xf32>
    %c0_3 = arith.constant 0 : index
    %c0_4 = arith.constant 0 : index
    %3 = vector.load %arg3[%c0_3, %c0_4] : memref<1x32xbf16, #tpu.memory_space<vmem>>, vector<1x32xbf16>
    %4 = arith.extf %3 : vector<1x32xbf16> to vector<1x32xf32>
    %5 = vector.broadcast %4 : vector<1x32xf32> to vector<2x32xf32>
    %6 = arith.addf %2, %5 : vector<2x32xf32>
    %7 = arith.mulf %6, %6 : vector<2x32xf32>
    %8 = arith.mulf %6, %7 : vector<2x32xf32>
    %cst_5 = arith.constant 4.471500e-02 : f32
    %9 = vector.broadcast %cst_5 : f32 to vector<2x32xf32>
    %10 = arith.mulf %9, %8 : vector<2x32xf32>
    %11 = arith.addf %6, %10 : vector<2x32xf32>
    %cst_6 = arith.constant 0.797884583 : f32
    %12 = vector.broadcast %cst_6 : f32 to vector<2x32xf32>
    %13 = arith.mulf %12, %11 : vector<2x32xf32>
    %14 = math.tanh %13 : vector<2x32xf32>
    %cst_7 = arith.constant 1.000000e+00 : f32
    %15 = vector.broadcast %cst_7 : f32 to vector<2x32xf32>
    %16 = arith.addf %15, %14 : vector<2x32xf32>
    %cst_8 = arith.constant 5.000000e-01 : f32
    %17 = vector.broadcast %cst_8 : f32 to vector<2x32xf32>
    %18 = arith.mulf %17, %16 : vector<2x32xf32>
    %19 = arith.mulf %6, %18 : vector<2x32xf32>
    %cst_9 = arith.constant dense<0.000000e+00> : vector<2xf32>
    %20 = vector.multi_reduction <add>, %19, %cst_9 [1] : vector<2x32xf32> to vector<2xf32>
    %21 = vector.shape_cast %20 : vector<2xf32> to vector<2x1xf32>
    %cst_10 = arith.constant 3.200000e+01 : f32
    %22 = vector.broadcast %cst_10 : f32 to vector<2x1xf32>
    %23 = arith.divf %21, %22 : vector<2x1xf32>
    %24 = vector.broadcast %23 : vector<2x1xf32> to vector<2x32xf32>
    %25 = arith.subf %19, %24 : vector<2x32xf32>
    %26 = arith.mulf %25, %25 : vector<2x32xf32>
    %cst_11 = arith.constant dense<0.000000e+00> : vector<2xf32>
    %27 = vector.multi_reduction <add>, %26, %cst_11 [1] : vector<2x32xf32> to vector<2xf32>
    %28 = vector.shape_cast %27 : vector<2xf32> to vector<2x1xf32>
    %cst_12 = arith.constant 3.200000e+01 : f32
    %29 = vector.broadcast %cst_12 : f32 to vector<2x1xf32>
    %30 = arith.divf %28, %29 : vector<2x1xf32>
    %31 = vector.broadcast %23 : vector<2x1xf32> to vector<2x32xf32>
    %32 = arith.subf %19, %31 : vector<2x32xf32>
    %cst_13 = arith.constant 9.99999974E-6 : f32
    %33 = vector.broadcast %cst_13 : f32 to vector<2x1xf32>
    %34 = arith.addf %30, %33 : vector<2x1xf32>
    %35 = math.rsqrt %34 : vector<2x1xf32>
    %36 = vector.broadcast %35 : vector<2x1xf32> to vector<2x32xf32>
    %37 = arith.mulf %32, %36 : vector<2x32xf32>
    %c0_14 = arith.constant 0 : index
    %c0_15 = arith.constant 0 : index
    %38 = vector.load %arg4[%c0_14, %c0_15] : memref<1x32xf32, #tpu.memory_space<vmem>>, vector<1x32xf32>
    %39 = vector.broadcast %38 : vector<1x32xf32> to vector<2x32xf32>
    %40 = arith.mulf %37, %39 : vector<2x32xf32>
    %c0_16 = arith.constant 0 : index
    %c0_17 = arith.constant 0 : index
    %41 = vector.load %arg5[%c0_16, %c0_17] : memref<1x32xf32, #tpu.memory_space<vmem>>, vector<1x32xf32>
    %42 = vector.broadcast %41 : vector<1x32xf32> to vector<2x32xf32>
    %43 = arith.addf %40, %42 : vector<2x32xf32>
    %44 = arith.truncf %43 : vector<2x32xf32> to vector<2x32xbf16>
    %c0_18 = arith.constant 0 : index
    %c0_19 = arith.constant 0 : index
    %45 = vector.load %arg6[%c0_18, %c0_19] : memref<32x128xbf16, #tpu.memory_space<vmem>>, vector<32x128xbf16>
    %cst_20 = arith.constant dense<0.000000e+00> : vector<2x128xf32>
    %46 = tpu.matmul %44, %45, %cst_20 {dimension_numbers = #tpu.dot_dimension_numbers<[1], [0], [0], [1], [0, 0, 1, 1], [], []>} : vector<2x32xbf16>, vector<32x128xbf16>, vector<2x128xf32> -> vector<2x128xf32>
    %c0_21 = arith.constant 0 : index
    %c0_22 = arith.constant 0 : index
    %47 = vector.load %arg7[%c0_21, %c0_22] : memref<1x128xbf16, #tpu.memory_space<vmem>>, vector<1x128xbf16>
    %48 = arith.extf %47 : vector<1x128xbf16> to vector<1x128xf32>
    %49 = vector.broadcast %48 : vector<1x128xf32> to vector<2x128xf32>
    %50 = arith.addf %46, %49 : vector<2x128xf32>
    %c0_23 = arith.constant 0 : index
    %c0_24 = arith.constant 0 : index
    %51 = vector.load %arg8[%c0_23, %c0_24] : memref<2x128xf32, #tpu.memory_space<vmem>>, vector<2x128xf32>
    tpu.vector_store %arg8[%c0_23, %c0_24], %50 {strides = array<i32>} : memref<2x128xf32, #tpu.memory_space<vmem>>, vector<2x128xf32>,
    return
  }
  func.func @transform_0(%arg0: i32) -> (i32, i32) {
    %c0_i32 = arith.constant 0 : i32
    %c0_i32_0 = arith.constant 0 : i32
    %c0_i32_1 = arith.constant 0 : i32
    return %c0_i32, %c0_i32_0 : i32, i32
  }
  func.func @transform_1(%arg0: i32) -> (i32, i32) {
    %c0_i32 = arith.constant 0 : i32
    %c0_i32_0 = arith.constant 0 : i32
    %c0_i32_1 = arith.constant 0 : i32
    return %c0_i32, %c0_i32_0 : i32, i32
  }
  func.func @transform_2(%arg0: i32) -> (i32, i32) {
    %c0_i32 = arith.constant 0 : i32
    %c0_i32_0 = arith.constant 0 : i32
    %c0_i32_1 = arith.constant 0 : i32
    return %c0_i32, %c0_i32_0 : i32, i32
  }
  func.func @transform_3(%arg0: i32) -> (i32, i32) {
    %c0_i32 = arith.constant 0 : i32
    %c0_i32_0 = arith.constant 0 : i32
    %c0_i32_1 = arith.constant 0 : i32
    return %c0_i32, %c0_i32_0 : i32, i32
  }
  func.func @transform_4(%arg0: i32) -> (i32, i32) {
    %c0_i32 = arith.constant 0 : i32
    %c0_i32_0 = arith.constant 0 : i32
    %c0_i32_1 = arith.constant 0 : i32
    return %c0_i32, %c0_i32_0 : i32, i32
  }
  func.func @transform_5(%arg0: i32) -> (i32, i32) {
    %c0_i32 = arith.constant 0 : i32
    %c0_i32_0 = arith.constant 0 : i32
    %c0_i32_1 = arith.constant 0 : i32
    return %c0_i32, %c0_i32_0 : i32, i32
  }
  func.func @transform_6(%arg0: i32) -> (i32, i32) {
    %c0_i32 = arith.constant 0 : i32
    %c0_i32_0 = arith.constant 0 : i32
    %c0_i32_1 = arith.constant 0 : i32
    return %c0_i32, %c0_i32_0 : i32, i32
  }
  func.func @transform_7(%arg0: i32) -> (i32, i32) {
    %c0_i32 = arith.constant 0 : i32
    %c0_i32_0 = arith.constant 0 : i32
    %c0_i32_1 = arith.constant 0 : i32
    return %c0_i32, %c0_i32_0 : i32, i32
  }
}

</mosaic_0001>

<llo_original>
// kernel: roberta_prompt_forward.15
$region0: #{roberta_prompt_forward.15}
  #allocation0 [shape = 'u32[]', space=smem, size = 0x4, offset = 0x4, fixed_abs, tag = 'smem constant byte address 0x4 - core index']
  #allocation1 [shape = 'u32[144,128]{1,0:T(1,128)}', space=vmem, size = 0x12000, scoped, tag = 'internal scratch']
  #allocation2 [shape = 'f32[16,32]{1,0:T(8,128)}', space=vmem, size = 0x2000, scoped, tag = 'scratch operand']
  %s0 = inlined_call_operand.vmem [shape: bf16[16,32], index: 0, kind: input, shape index: {}]
  %s1 = inlined_call_operand.vmem [shape: bf16[32,32], index: 1, kind: input, shape index: {}]
  %s2 = inlined_call_operand.vmem [shape: bf16[1,32], index: 2, kind: input, shape index: {}]
  %s3 = inlined_call_operand.vmem [shape: bf16[16,32], index: 3, kind: input, shape index: {}]
  %s4 = inlined_call_operand.vmem [shape: f32[1,32], index: 4, kind: input, shape index: {}]
  %s5 = inlined_call_operand.vmem [shape: f32[1,32], index: 5, kind: input, shape index: {}]
  %s6 = inlined_call_operand.vmem [shape: bf16[16,32], index: 6, kind: output, shape index: {}]
  %s7 = sld [smem:[#allocation0]]
  $region42: #{roberta_prompt_forward.15} parent=0
    _
  %s9 = ssub.s32 1, %s7
  %s10 = scalar_select 0, %s9, %s7
  // Predicated region
  $region2: #{roberta_prompt_forward.15} parent=0 // pred_check
    _
  $region3: #{roberta_prompt_forward.15} parent=0 // pred_check_branch
    %12 = sbr.rel (0) target = $region5
  $region4: #{roberta_prompt_forward.15} parent=0 // pred_region
    _
  $region5: #{roberta_prompt_forward.15} parent=0 // pred_fallthru
    _
  // Predicated region
  $region6: #{roberta_prompt_forward.15} parent=0 // pred_check
    _
  $region7: #{roberta_prompt_forward.15} parent=0 // pred_check_branch
    %14 = sbr.rel (0) target = $region9
  $region8: #{roberta_prompt_forward.15} parent=0 // pred_region
    _
  $region9: #{roberta_prompt_forward.15} parent=0 // pred_fallthru
    _
  // Predicated region
  $region10: #{roberta_prompt_forward.15} parent=0 // pred_check
    _
  $region11: #{roberta_prompt_forward.15} parent=0 // pred_check_branch
    %16 = sbr.rel (0) target = $region13
  $region12: #{roberta_prompt_forward.15} parent=0 // pred_region
    _
  $region13: #{roberta_prompt_forward.15} parent=0 // pred_fallthru
    _
  // Predicated region
  $region14: #{roberta_prompt_forward.15} parent=0 // pred_check
    _
  $region15: #{roberta_prompt_forward.15} parent=0 // pred_check_branch
    %18 = sbr.rel (0) target = $region17
  $region16: #{roberta_prompt_forward.15} parent=0 // pred_region
    _
  $region17: #{roberta_prompt_forward.15} parent=0 // pred_fallthru
    _
  // Predicated region
  $region18: #{roberta_prompt_forward.15} parent=0 // pred_check
    _
  $region19: #{roberta_prompt_forward.15} parent=0 // pred_check_branch
    %20 = sbr.rel (0) target = $region21
  $region20: #{roberta_prompt_forward.15} parent=0 // pred_region
    _
  $region21: #{roberta_prompt_forward.15} parent=0 // pred_fallthru
    _
  // Predicated region
  $region22: #{roberta_prompt_forward.15} parent=0 // pred_check
    _
  $region23: #{roberta_prompt_forward.15} parent=0 // pred_check_branch
    %22 = sbr.rel (0) target = $region25
  $region24: #{roberta_prompt_forward.15} parent=0 // pred_region
    _
  $region25: #{roberta_prompt_forward.15} parent=0 // pred_fallthru
    _
  %p24 = scmp.eq.s32.totalorder 0, 0
  // Predicated region
  $region26: #{roberta_prompt_forward.15} parent=0 // pred_check
    %p25 = pneg %p24
  $region27: #{roberta_prompt_forward.15} parent=0 // pred_check_branch
    %27 = sbr.rel (%p25) target = $region29
  $region28: #{roberta_prompt_forward.15} parent=0 // pred_region
    %vm28 = vcmask 261120
    %29 = vst.msk [vmem:[#allocation2] sm:$0xff] %vm28, 0.0
    %30 = vst.msk [vmem:[#allocation2 + $0x8] sm:$0xff] %vm28, 0.0
  $region29: #{roberta_prompt_forward.15} parent=0 // pred_fallthru
    _
  %v31 = vld [vmem:[#allocation2] sm:$0xff]
  %v32 = vld [vmem:[#allocation2 + $0x8] sm:$0xff]
  %v33 = vld [vmem:[%s0] sm:$0xf]
  %v34 = vld [vmem:[%s0 + $0x4] sm:$0xf]
  %v35 = vld [vmem:[%s1] sm:$0xf]
  %v36 = vld [vmem:[%s1 + $0x4] sm:$0xf]
  %v37 = vld [vmem:[%s1 + $0x8] sm:$0xf]
  %v38 = vld [vmem:[%s1 + $0xc] sm:$0xf]
  %v41 = vunpack.c.l.b16 %v33
  %v42 = vunpack.c.l.b16 %v34
  %v43 = vpack.c.b16 %v42, %v41
  %v48 = vunpack.c.l.b16 %v35
  %v49 = vunpack.c.l.b16 %v36
  %v50 = vunpack.c.l.b16 %v37
  %v51 = vunpack.c.l.b16 %v38
  %v52 = vpack.c.b16 %v49, %v48
  %v53 = vpack.c.b16 %v51, %v50
  %vm56 = vcmask 261120
  %v58 = vsel %vm56, %v43, 0
  %60 = vmatprep.subr.bf16.mxu0 0
  %61 = vmatpush1.bf16.msra.mxu0 %v52
  %62 = vmatprep.subr.bf16.mxu0 0
  %63 = vmatpush1.bf16.msra.mxu0 %v53
  %64 = vmatprep.subr.bf16.mxu0 0
  %65 = vmatpush1.bf16.msra.mxu0 0
  %66 = vmatprep.subr.bf16.mxu0 0
  %67 = vmatpush1.bf16.msra.mxu0 0
  %68 = vmatprep.subr.bf16.mxu0 0
  %69 = vmatpush1.bf16.msra.mxu0 0
  %70 = vmatprep.subr.bf16.mxu0 0
  %71 = vmatpush1.bf16.msra.mxu0 0
  %72 = vmatprep.subr.bf16.mxu0 0
  %73 = vmatpush1.bf16.msra.mxu0 0
  %74 = vmatprep.subr.bf16.mxu0 0
  %75 = vmatpush1.bf16.msra.mxu0 0
  %76 = vmatprep.subr.bf16.mxu0 0
  %77 = vmatpush1.bf16.msra.mxu0 0
  %78 = vmatprep.subr.bf16.mxu0 0
  %79 = vmatpush1.bf16.msra.mxu0 0
  %80 = vmatprep.subr.bf16.mxu0 0
  %81 = vmatpush1.bf16.msra.mxu0 0
  %82 = vmatprep.subr.bf16.mxu0 0
  %83 = vmatpush1.bf16.msra.mxu0 0
  %84 = vmatprep.subr.bf16.mxu0 0
  %85 = vmatpush1.bf16.msra.mxu0 0
  %86 = vmatprep.subr.bf16.mxu0 0
  %87 = vmatpush1.bf16.msra.mxu0 0
  %88 = vmatprep.subr.bf16.mxu0 0
  %89 = vmatpush1.bf16.msra.mxu0 0
  %90 = vmatprep.subr.bf16.mxu0 0
  %91 = vmatpush1.bf16.msra.mxu0 0
  %92 = vmatprep.mubr.bf16.mxu0 0
  %93 = vmatmul.mubr.bf16.gmra.mrb[0].mxu0 %v58
  %v94 = vpop.f32.mrb[0].mxu0
  %v95 = vadd.f32 0.0, %v94
  %v96 = vpop.f32.mrb[0].mxu0
  %v97 = vpop.f32.mrb[0].mxu0
  %v98 = vadd.f32 0.0, %v97
  %v99 = vpop.f32.mrb[0].mxu0
  %100 = vdwg.mxu0
  %v101 = vadd.f32 %v31, %v95
  %v102 = vadd.f32 %v32, %v98
  %103 = vst.msk [vmem:[#allocation2] sm:$0xff] %vm56, %v101
  %104 = vst.msk [vmem:[#allocation2 + $0x8] sm:$0xff] %vm56, %v102
  // Predicated region
  $region30: #{roberta_prompt_forward.15} parent=0 // pred_check
    %p105 = pneg %p24
  $region31: #{roberta_prompt_forward.15} parent=0 // pred_check_branch
    %107 = sbr.rel (%p105) target = $region33
  $region32: #{roberta_prompt_forward.15} parent=0 // pred_region
    %v108 = vld [vmem:[#allocation2] sm:$0xff]
    %v109 = vld [vmem:[#allocation2 + $0x8] sm:$0xff]
    %v110 = vld [vmem:[%s2] sm:$0x1]
    %v111 = vunpack.c.l.bf16 %v110
    %v112 = vlaneseq
    %v113 = vshrl.u32 %v112, 7
    %v114 = vsub.s32 0, %v113
    %v115 = vrot.slane %v111, %v114
    %v116 = vadd.f32 %v108, %v115
    %v117 = vadd.f32 %v109, %v115
    %v118 = vld [vmem:[%s3] sm:$0xf]
    %v119 = vld [vmem:[%s3 + $0x4] sm:$0xf]
    %v120 = vunpack.c.l.bf16 %v118
    %v121 = vunpack.c.l.bf16 %v119
    %v122 = vadd.f32 %v116, %v120
    %v123 = vadd.f32 %v117, %v121
    %v124 = vsel %vm56, %v122, 0.0
    %125 = vadd.xlane.f32.xlu0 %v124
    %v126 = vpop.xlane.xlu0 %125
    %v127 = vsel %vm56, %v123, 0.0
    %128 = vadd.xlane.f32.xlu0 %v127
    %v129 = vpop.xlane.xlu0 %128
    %v130 = vrcp.pop 32.0
    %v131 = vmul.f32 %v126, %v130
    %v132 = vmul.f32 %v129, %v130
    %v133 = vsub.f32 %v122, %v131
    %v134 = vsub.f32 %v123, %v132
    %v135 = vmul.f32 %v133, %v133
    %v136 = vmul.f32 %v134, %v134
    %v137 = vsel %vm56, %v135, 0.0
    %138 = vadd.xlane.f32.xlu0 %v137
    %v139 = vpop.xlane.xlu0 %138
    %v140 = vsel %vm56, %v136, 0.0
    %141 = vadd.xlane.f32.xlu0 %v140
    %v142 = vpop.xlane.xlu0 %141
    %v143 = vmul.f32 %v139, %v130
    %v144 = vmul.f32 %v142, %v130
    %v145 = vadd.f32 %v143, 1e-05
    %v146 = vadd.f32 %v144, 1e-05
    %v147 = vrsqrt.pop %v145
    %v148 = vrsqrt.pop %v146
    %v149 = vmul.f32 %v133, %v147
    %v150 = vmul.f32 %v134, %v148
    %v151 = vld [vmem:[%s4] sm:$0x1]
    %v153 = vlaneseq
    %v154 = vshrl.u32 %v153, 7
    %v155 = vsub.s32 0, %v154
    %v156 = vrot.slane %v151, %v155
    %v158 = vmul.f32 %v149, %v156
    %v159 = vmul.f32 %v150, %v156
    %v160 = vld [vmem:[%s5] sm:$0x1]
    %v162 = vlaneseq
    %v163 = vshrl.u32 %v162, 7
    %v164 = vsub.s32 0, %v163
    %v165 = vrot.slane %v160, %v164
    %v167 = vadd.f32 %v158, %v165
    %v168 = vadd.f32 %v159, %v165
    %v169 = vpack.c.bf16 %v168, %v167
    %v171 = vunpack.c.l.b16 %v169
    %v172 = vunpack.c.h.b16 %v169
    %v173 = vpack.c.b16 %v171, %v171
    %v174 = vpack.c.b16 %v172, %v172
    %vm177 = vcmask 257024
    %178 = vst.msk [vmem:[%s6] sm:$0xf] %vm177, %v173
    %179 = vst.msk [vmem:[%s6 + $0x4] sm:$0xf] %vm177, %v174
  $region33: #{roberta_prompt_forward.15} parent=0 // pred_fallthru
    _
  // Predicated region
  $region34: #{roberta_prompt_forward.15} parent=0 // pred_check
    _
  $region35: #{roberta_prompt_forward.15} parent=0 // pred_check_branch
    %181 = sbr.rel (0) target = $region37
  $region36: #{roberta_prompt_forward.15} parent=0 // pred_region
    _
  $region37: #{roberta_prompt_forward.15} parent=0 // pred_fallthru
    _
  // Predicated region
  $region38: #{roberta_prompt_forward.15} parent=0 // pred_check
    _
  $region39: #{roberta_prompt_forward.15} parent=0 // pred_check_branch
    %183 = sbr.rel (0) target = $region41
  $region40: #{roberta_prompt_forward.15} parent=0 // pred_region
    _
  $region41: #{roberta_prompt_forward.15} parent=0 // pred_fallthru
    _

// kernel: roberta_prompt_forward.12
$region0: #{roberta_prompt_forward.12}
  #allocation0 [shape = 'u32[]', space=smem, size = 0x4, offset = 0x4, fixed_abs, tag = 'smem constant byte address 0x4 - core index']
  #allocation1 [shape = 'u32[144,128]{1,0:T(1,128)}', space=vmem, size = 0x12000, scoped, tag = 'internal scratch']
  %s0 = inlined_call_operand.vmem [shape: bf16[16,32], index: 0, kind: input, shape index: {}]
  %s1 = inlined_call_operand.vmem [shape: f32[1,32], index: 1, kind: input, shape index: {}]
  %s2 = inlined_call_operand.vmem [shape: f32[1,32], index: 2, kind: input, shape index: {}]
  %s3 = inlined_call_operand.vmem [shape: bf16[16,32], index: 3, kind: output, shape index: {}]
  %s4 = sld [smem:[#allocation0]]
  $region22: #{roberta_prompt_forward.12} parent=0
    _
  %s6 = ssub.s32 1, %s4
  %s7 = scalar_select 0, %s6, %s4
  // Predicated region
  $region2: #{roberta_prompt_forward.12} parent=0 // pred_check
    _
  $region3: #{roberta_prompt_forward.12} parent=0 // pred_check_branch
    %9 = sbr.rel (0) target = $region5
  $region4: #{roberta_prompt_forward.12} parent=0 // pred_region
    _
  $region5: #{roberta_prompt_forward.12} parent=0 // pred_fallthru
    _
  // Predicated region
  $region6: #{roberta_prompt_forward.12} parent=0 // pred_check
    _
  $region7: #{roberta_prompt_forward.12} parent=0 // pred_check_branch
    %11 = sbr.rel (0) target = $region9
  $region8: #{roberta_prompt_forward.12} parent=0 // pred_region
    _
  $region9: #{roberta_prompt_forward.12} parent=0 // pred_fallthru
    _
  // Predicated region
  $region10: #{roberta_prompt_forward.12} parent=0 // pred_check
    _
  $region11: #{roberta_prompt_forward.12} parent=0 // pred_check_branch
    %13 = sbr.rel (0) target = $region13
  $region12: #{roberta_prompt_forward.12} parent=0 // pred_region
    _
  $region13: #{roberta_prompt_forward.12} parent=0 // pred_fallthru
    _
  %v14 = vld [vmem:[%s0] sm:$0xf]
  %v15 = vld [vmem:[%s0 + $0x4] sm:$0xf]
  %v16 = vunpack.c.l.bf16 %v14
  %v17 = vunpack.c.l.bf16 %v15
  %vm18 = vcmask 261120
  %v19 = vsel %vm18, %v16, 0.0
  %20 = vadd.xlane.f32.xlu0 %v19
  %v21 = vpop.xlane.xlu0 %20
  %v22 = vsel %vm18, %v17, 0.0
  %23 = vadd.xlane.f32.xlu0 %v22
  %v24 = vpop.xlane.xlu0 %23
  %v25 = vrcp.pop 32.0
  %v26 = vmul.f32 %v21, %v25
  %v27 = vmul.f32 %v24, %v25
  %v28 = vsub.f32 %v16, %v26
  %v29 = vsub.f32 %v17, %v27
  %v30 = vmul.f32 %v28, %v28
  %v31 = vmul.f32 %v29, %v29
  %v32 = vsel %vm18, %v30, 0.0
  %33 = vadd.xlane.f32.xlu0 %v32
  %v34 = vpop.xlane.xlu0 %33
  %v35 = vsel %vm18, %v31, 0.0
  %36 = vadd.xlane.f32.xlu0 %v35
  %v37 = vpop.xlane.xlu0 %36
  %v38 = vmul.f32 %v34, %v25
  %v39 = vmul.f32 %v37, %v25
  %v40 = vadd.f32 %v38, 1e-05
  %v41 = vadd.f32 %v39, 1e-05
  %v42 = vrsqrt.pop %v40
  %v43 = vrsqrt.pop %v41
  %v44 = vmul.f32 %v28, %v42
  %v45 = vmul.f32 %v29, %v43
  %v46 = vld [vmem:[%s1] sm:$0x1]
  %v48 = vlaneseq
  %v49 = vshrl.u32 %v48, 7
  %v50 = vsub.s32 0, %v49
  %v51 = vrot.slane %v46, %v50
  %v53 = vmul.f32 %v44, %v51
  %v54 = vmul.f32 %v45, %v51
  %v55 = vld [vmem:[%s2] sm:$0x1]
  %v57 = vlaneseq
  %v58 = vshrl.u32 %v57, 7
  %v59 = vsub.s32 0, %v58
  %v60 = vrot.slane %v55, %v59
  %v62 = vadd.f32 %v53, %v60
  %v63 = vadd.f32 %v54, %v60
  %v64 = vpack.c.bf16 %v63, %v62
  %v66 = vunpack.c.l.b16 %v64
  %v67 = vunpack.c.h.b16 %v64
  %v68 = vpack.c.b16 %v66, %v66
  %v69 = vpack.c.b16 %v67, %v67
  %vm72 = vcmask 257024
  %73 = vst.msk [vmem:[%s3] sm:$0xf] %vm72, %v68
  %74 = vst.msk [vmem:[%s3 + $0x4] sm:$0xf] %vm72, %v69
  // Predicated region
  $region14: #{roberta_prompt_forward.12} parent=0 // pred_check
    _
  $region15: #{roberta_prompt_forward.12} parent=0 // pred_check_branch
    %76 = sbr.rel (0) target = $region17
  $region16: #{roberta_prompt_forward.12} parent=0 // pred_region
    _
  $region17: #{roberta_prompt_forward.12} parent=0 // pred_fallthru
    _
  // Predicated region
  $region18: #{roberta_prompt_forward.12} parent=0 // pred_check
    _
  $region19: #{roberta_prompt_forward.12} parent=0 // pred_check_branch
    %78 = sbr.rel (0) target = $region21
  $region20: #{roberta_prompt_forward.12} parent=0 // pred_region
    _
  $region21: #{roberta_prompt_forward.12} parent=0 // pred_fallthru
    _

// kernel: roberta_prompt_forward.13
$region0: #{roberta_prompt_forward.13}
  #allocation0 [shape = 'u32[]', space=smem, size = 0x4, offset = 0x4, fixed_abs, tag = 'smem constant byte address 0x4 - core index']
  #allocation1 [shape = 'u32[144,128]{1,0:T(1,128)}', space=vmem, size = 0x12000, scoped, tag = 'internal scratch']
  #allocation2 [shape = 'f32[16,96]{1,0:T(8,128)}', space=vmem, size = 0x2000, scoped, tag = 'scratch operand']
  %s0 = inlined_call_operand.vmem [shape: bf16[16,32], index: 0, kind: input, shape index: {}]
  %s1 = inlined_call_operand.vmem [shape: bf16[32,96], index: 1, kind: input, shape index: {}]
  %s2 = inlined_call_operand.vmem [shape: bf16[1,96], index: 2, kind: input, shape index: {}]
  %s3 = inlined_call_operand.vmem [shape: bf16[16,96], index: 3, kind: output, shape index: {}]
  %s4 = sld [smem:[#allocation0]]
  $region30: #{roberta_prompt_forward.13} parent=0
    _
  %s6 = ssub.s32 1, %s4
  %s7 = scalar_select 0, %s6, %s4
  // Predicated region
  $region2: #{roberta_prompt_forward.13} parent=0 // pred_check
    _
  $region3: #{roberta_prompt_forward.13} parent=0 // pred_check_branch
    %9 = sbr.rel (0) target = $region5
  $region4: #{roberta_prompt_forward.13} parent=0 // pred_region
    _
  $region5: #{roberta_prompt_forward.13} parent=0 // pred_fallthru
    _
  // Predicated region
  $region6: #{roberta_prompt_forward.13} parent=0 // pred_check
    _
  $region7: #{roberta_prompt_forward.13} parent=0 // pred_check_branch
    %11 = sbr.rel (0) target = $region9
  $region8: #{roberta_prompt_forward.13} parent=0 // pred_region
    _
  $region9: #{roberta_prompt_forward.13} parent=0 // pred_fallthru
    _
  // Predicated region
  $region10: #{roberta_prompt_forward.13} parent=0 // pred_check
    _
  $region11: #{roberta_prompt_forward.13} parent=0 // pred_check_branch
    %13 = sbr.rel (0) target = $region13
  $region12: #{roberta_prompt_forward.13} parent=0 // pred_region
    _
  $region13: #{roberta_prompt_forward.13} parent=0 // pred_fallthru
    _
  %p15 = scmp.eq.s32.totalorder 0, 0
  // Predicated region
  $region14: #{roberta_prompt_forward.13} parent=0 // pred_check
    %p16 = pneg %p15
  $region15: #{roberta_prompt_forward.13} parent=0 // pred_check_branch
    %18 = sbr.rel (%p16) target = $region17
  $region16: #{roberta_prompt_forward.13} parent=0 // pred_region
    %vm19 = vcmask 785408
    %20 = vst.msk [vmem:[#allocation2] sm:$0xff] %vm19, 0.0
    %21 = vst.msk [vmem:[#allocation2 + $0x8] sm:$0xff] %vm19, 0.0
  $region17: #{roberta_prompt_forward.13} parent=0 // pred_fallthru
    _
  %v22 = vld [vmem:[#allocation2] sm:$0xff]
  %v23 = vld [vmem:[#allocation2 + $0x8] sm:$0xff]
  %v24 = vld [vmem:[%s0] sm:$0xf]
  %v25 = vld [vmem:[%s0 + $0x4] sm:$0xf]
  %v26 = vld [vmem:[%s1] sm:$0xf]
  %v27 = vld [vmem:[%s1 + $0x4] sm:$0xf]
  %v28 = vld [vmem:[%s1 + $0x8] sm:$0xf]
  %v29 = vld [vmem:[%s1 + $0xc] sm:$0xf]
  %v32 = vunpack.c.l.b16 %v24
  %v33 = vunpack.c.l.b16 %v25
  %v34 = vpack.c.b16 %v33, %v32
  %v39 = vunpack.c.l.b16 %v26
  %v40 = vunpack.c.l.b16 %v27
  %v41 = vunpack.c.l.b16 %v28
  %v42 = vunpack.c.l.b16 %v29
  %v43 = vpack.c.b16 %v40, %v39
  %v44 = vpack.c.b16 %v42, %v41
  %vm47 = vcmask 261120
  %v49 = vsel %vm47, %v34, 0
  %51 = vmatprep.subr.bf16.mxu0 0
  %52 = vmatpush1.bf16.msra.mxu0 %v43
  %53 = vmatprep.subr.bf16.mxu0 0
  %54 = vmatpush1.bf16.msra.mxu0 %v44
  %55 = vmatprep.subr.bf16.mxu0 0
  %56 = vmatpush1.bf16.msra.mxu0 0
  %57 = vmatprep.subr.bf16.mxu0 0
  %58 = vmatpush1.bf16.msra.mxu0 0
  %59 = vmatprep.subr.bf16.mxu0 0
  %60 = vmatpush1.bf16.msra.mxu0 0
  %61 = vmatprep.subr.bf16.mxu0 0
  %62 = vmatpush1.bf16.msra.mxu0 0
  %63 = vmatprep.subr.bf16.mxu0 0
  %64 = vmatpush1.bf16.msra.mxu0 0
  %65 = vmatprep.subr.bf16.mxu0 0
  %66 = vmatpush1.bf16.msra.mxu0 0
  %67 = vmatprep.subr.bf16.mxu0 0
  %68 = vmatpush1.bf16.msra.mxu0 0
  %69 = vmatprep.subr.bf16.mxu0 0
  %70 = vmatpush1.bf16.msra.mxu0 0
  %71 = vmatprep.subr.bf16.mxu0 0
  %72 = vmatpush1.bf16.msra.mxu0 0
  %73 = vmatprep.subr.bf16.mxu0 0
  %74 = vmatpush1.bf16.msra.mxu0 0
  %75 = vmatprep.subr.bf16.mxu0 0
  %76 = vmatpush1.bf16.msra.mxu0 0
  %77 = vmatprep.subr.bf16.mxu0 0
  %78 = vmatpush1.bf16.msra.mxu0 0
  %79 = vmatprep.subr.bf16.mxu0 0
  %80 = vmatpush1.bf16.msra.mxu0 0
  %81 = vmatprep.subr.bf16.mxu0 0
  %82 = vmatpush1.bf16.msra.mxu0 0
  %83 = vmatprep.mubr.bf16.mxu0 0
  %84 = vmatmul.mubr.bf16.gmra.mrb[0].mxu0 %v49
  %v85 = vpop.f32.mrb[0].mxu0
  %v86 = vadd.f32 0.0, %v85
  %v87 = vpop.f32.mrb[0].mxu0
  %v88 = vpop.f32.mrb[0].mxu0
  %v89 = vadd.f32 0.0, %v88
  %v90 = vpop.f32.mrb[0].mxu0
  %91 = vdwg.mxu0
  %v92 = vadd.f32 %v22, %v86
  %v93 = vadd.f32 %v23, %v89
  %vm94 = vcmask 785408
  %95 = vst.msk [vmem:[#allocation2] sm:$0xff] %vm94, %v92
  %96 = vst.msk [vmem:[#allocation2 + $0x8] sm:$0xff] %vm94, %v93
  // Predicated region
  $region18: #{roberta_prompt_forward.13} parent=0 // pred_check
    %p97 = pneg %p15
  $region19: #{roberta_prompt_forward.13} parent=0 // pred_check_branch
    %99 = sbr.rel (%p97) target = $region21
  $region20: #{roberta_prompt_forward.13} parent=0 // pred_region
    %v100 = vld [vmem:[#allocation2] sm:$0xff]
    %v101 = vld [vmem:[#allocation2 + $0x8] sm:$0xff]
    %v102 = vld [vmem:[%s2] sm:$0x1]
    %v103 = vunpack.c.l.bf16 %v102
    %v104 = vlaneseq
    %v105 = vshrl.u32 %v104, 7
    %v106 = vsub.s32 0, %v105
    %v107 = vrot.slane %v103, %v106
    %v108 = vadd.f32 %v100, %v107
    %v109 = vadd.f32 %v101, %v107
    %v110 = vpack.c.bf16 %v109, %v108
    %v112 = vunpack.c.l.b16 %v110
    %v113 = vunpack.c.h.b16 %v110
    %v114 = vpack.c.b16 %v112, %v112
    %v115 = vpack.c.b16 %v113, %v113
    %vm118 = vcmask 781312
    %119 = vst.msk [vmem:[%s3] sm:$0xf] %vm118, %v114
    %120 = vst.msk [vmem:[%s3 + $0x4] sm:$0xf] %vm118, %v115
  $region21: #{roberta_prompt_forward.13} parent=0 // pred_fallthru
    _
  // Predicated region
  $region22: #{roberta_prompt_forward.13} parent=0 // pred_check
    _
  $region23: #{roberta_prompt_forward.13} parent=0 // pred_check_branch
    %122 = sbr.rel (0) target = $region25
  $region24: #{roberta_prompt_forward.13} parent=0 // pred_region
    _
  $region25: #{roberta_prompt_forward.13} parent=0 // pred_fallthru
    _
  // Predicated region
  $region26: #{roberta_prompt_forward.13} parent=0 // pred_check
    _
  $region27: #{roberta_prompt_forward.13} parent=0 // pred_check_branch
    %124 = sbr.rel (0) target = $region29
  $region28: #{roberta_prompt_forward.13} parent=0 // pred_region
    _
  $region29: #{roberta_prompt_forward.13} parent=0 // pred_fallthru
    _

// kernel: roberta_prompt_forward.14
$region0: #{roberta_prompt_forward.14}
  #allocation0 [shape = 'u32[]', space=smem, size = 0x4, offset = 0x4, fixed_abs, tag = 'smem constant byte address 0x4 - core index']
  #allocation1 [shape = 'u32[144,128]{1,0:T(1,128)}', space=vmem, size = 0x12000, scoped, tag = 'internal scratch']
  #allocation2 [shape = 'bf16[32,8]{1,0:T(16,128)(2,1)}', space=vmem, size = 0x2000, scoped, tag = 'scratch operand']
  %s0 = inlined_call_operand.vmem [shape: bf16[2,8,96], index: 0, kind: input, shape index: {}]
  %s1 = inlined_call_operand.vmem [shape: f32[2,1,8], index: 1, kind: input, shape index: {}]
  %s2 = inlined_call_operand.vmem [shape: bf16[2,8,32], index: 2, kind: output, shape index: {}]
  %s3 = sld [smem:[#allocation0]]
  $region45: #{roberta_prompt_forward.14} parent=0
    _
  %s5 = ssub.s32 1, %s3
  %s6 = scalar_select 0, %s5, %s3
  loop: start=0, step=1, limit=4
  $region2: #{roberta_prompt_forward.14} parent=0 // loop_pre_header
    _
  $region3: #{roberta_prompt_forward.14} parent=0 // loop_header
    %s8 = sphi 0, %s12
    %p9 = scmp.ge.s32.totalorder %s8, 4
    %s15 = sphi 0, %s27
    %s16 = sphi 0, %s23
    %s17 = sphi 0, %s15
    %s18 = sphi 0, %s16
    %s19 = sphi 0, %s17
    %s20 = sphi 0, %s18
    %s30 = sphi 0, %s32
    %s33 = sphi 0, %s30
    %s34 = sphi 0, %s33
    %s50 = sphi 0, %s34
    %s56 = sphi 0, %s58
    %s59 = sphi 0, %s56
    %s60 = sphi 0, %s59
    %s76 = sphi 0, %s60
    %s84 = sphi 0, %s86
    %s87 = sphi 0, %s84
    %s88 = sphi 0, %s87
    %s104 = sphi 0, %s88
  $region4: #{roberta_prompt_forward.14} parent=0 // loop_header_branch
    %11 = sbr.rel (%p9) target = $region8
  $region5: #{roberta_prompt_forward.14} parent=0 // loop_body
    %s13 = ssub.s32 %s8, 1
    %s14 = ssub.s32 %s8, 2
    %s21 = sadd.s32 1, %s16
    %p22 = scmp.ge.s32.totalorder %s21, 1
    %s23 = scalar_select %p22, 0, %s21
    %s24 = sadd.s32 1, %s15
    %s25 = scalar_select %p22, %s24, %s15
    %p26 = scmp.ge.s32.totalorder %s25, 2
    %s27 = scalar_select %p26, 0, %s25
    %s28 = ssub.s32 %s15, %s27
    %p29 = scmp.eq.s32.totalorder %s28, 0
    %s31 = sadd.s32 %s30, 1
    %s32 = scalar_select %p29, %s30, %s31
    %p35 = pneg %p29
    %p36 = scmp.eq.s32.totalorder %s8, 1
    %p37 = por %p35, %p36
    %p38 = scmp.ne.s32.totalorder %s30, %s33
    %p39 = scmp.eq.s32.totalorder %s8, 0
    %p40 = por %p38, %p39
    %p41 = scmp.ne.s32.totalorder %s30, %s33
    %p42 = scmp.eq.s32.totalorder %s13, 1
    %p43 = por %p41, %p42
    %p44 = scmp.ne.s32.totalorder %s33, %s34
    %p45 = scmp.eq.s32.totalorder %s13, 0
    %p46 = por %p44, %p45
    %p47 = scmp.ne.s32.totalorder %s33, %s34
    %p48 = scmp.eq.s32.totalorder %s14, 1
    %p49 = por %p47, %p48
    %p51 = scmp.ne.s32.totalorder %s34, %s50
    %p52 = scmp.eq.s32.totalorder %s14, 0
    %p53 = por %p51, %p52
    %s54 = ssub.s32 %s15, %s27
    %p55 = scmp.eq.s32.totalorder %s54, 0
    %s57 = sadd.s32 %s56, 1
    %s58 = scalar_select %p55, %s56, %s57
    %p61 = pneg %p55
    %p62 = scmp.eq.s32.totalorder %s8, 1
    %p63 = por %p61, %p62
    %p64 = scmp.ne.s32.totalorder %s56, %s59
    %p65 = scmp.eq.s32.totalorder %s8, 0
    %p66 = por %p64, %p65
    %p67 = scmp.ne.s32.totalorder %s56, %s59
    %p68 = scmp.eq.s32.totalorder %s13, 1
    %p69 = por %p67, %p68
    %p70 = scmp.ne.s32.totalorder %s59, %s60
    %p71 = scmp.eq.s32.totalorder %s13, 0
    %p72 = por %p70, %p71
    %p73 = scmp.ne.s32.totalorder %s59, %s60
    %p74 = scmp.eq.s32.totalorder %s14, 1
    %p75 = por %p73, %p74
    %p77 = scmp.ne.s32.totalorder %s60, %s76
    %p78 = scmp.eq.s32.totalorder %s14, 0
    %p79 = por %p77, %p78
    %s80 = ssub.s32 %s15, %s27
    %s81 = ssub.s32 %s16, %s23
    %s82 = sor.u32 %s80, %s81
    %p83 = scmp.eq.s32.totalorder %s82, 0
    %s85 = sadd.s32 %s84, 1
    %s86 = scalar_select %p83, %s84, %s85
    %p89 = pneg %p83
    %p90 = scmp.eq.s32.totalorder %s8, 1
    %p91 = por %p89, %p90
    %p92 = scmp.ne.s32.totalorder %s84, %s87
    %p93 = scmp.eq.s32.totalorder %s8, 0
    %p94 = por %p92, %p93
    %p95 = scmp.ne.s32.totalorder %s84, %s87
    %p96 = scmp.eq.s32.totalorder %s13, 1
    %p97 = por %p95, %p96
    %p98 = scmp.ne.s32.totalorder %s87, %s88
    %p99 = scmp.eq.s32.totalorder %s13, 0
    %p100 = por %p98, %p99
    %p101 = scmp.ne.s32.totalorder %s87, %s88
    %p102 = scmp.eq.s32.totalorder %s14, 1
    %p103 = por %p101, %p102
    %p105 = scmp.ne.s32.totalorder %s88, %s104
    %p106 = scmp.eq.s32.totalorder %s14, 0
    %p107 = por %p105, %p106
    %p108 = scmp.le.s32.totalorder 1, %s8
    %p109 = scmp.lt.s32.totalorder %s8, 3
    %p110 = pnand %p108, %p109
    %p111 = pneg %p110
    // Predicated region
    $region9: #{roberta_prompt_forward.14} parent=5 // pred_check
      _
    $region10: #{roberta_prompt_forward.14} parent=5 // pred_check_branch
      %113 = sbr.rel (%p110) target = $region12
    $region11: #{roberta_prompt_forward.14} parent=5 // pred_region
      %s114 = ssub.s32 %s8, 1
    $region12: #{roberta_prompt_forward.14} parent=5 // pred_fallthru
      _
    %p115 = scmp.lt.s32.totalorder %s8, 2
    // Predicated region
    $region13: #{roberta_prompt_forward.14} parent=5 // pred_check
      %p116 = pneg %p115
    $region14: #{roberta_prompt_forward.14} parent=5 // pred_check_branch
      %118 = sbr.rel (%p116) target = $region16
    $region15: #{roberta_prompt_forward.14} parent=5 // pred_region
      // Predicated region
      $region17: #{roberta_prompt_forward.14} parent=15 // pred_check
        %p119 = pneg %p40
      $region18: #{roberta_prompt_forward.14} parent=15 // pred_check_branch
        %121 = sbr.rel (%p119) target = $region20
      $region19: #{roberta_prompt_forward.14} parent=15 // pred_region
        %p122 = scmp.lt.s32.totalorder %s15, 1
        %s123 = scalar_select %p122, %s15, 1
        %s124 = smul.addr %s123, 4
        %s125 = scalar_lea.vmem %s0, %s124
      $region20: #{roberta_prompt_forward.14} parent=15 // pred_fallthru
        _
      // Predicated region
      $region21: #{roberta_prompt_forward.14} parent=15 // pred_check
        %p126 = pneg %p66
      $region22: #{roberta_prompt_forward.14} parent=15 // pred_check_branch
        %128 = sbr.rel (%p126) target = $region24
      $region23: #{roberta_prompt_forward.14} parent=15 // pred_region
        %p129 = scmp.lt.s32.totalorder %s15, 1
        %s130 = scalar_select %p129, %s15, 1
        %s131 = scalar_lea.vmem %s1, %s130
      $region24: #{roberta_prompt_forward.14} parent=15 // pred_fallthru
        _
    $region16: #{roberta_prompt_forward.14} parent=5 // pred_fallthru
      _
    %p132 = scmp.le.s32.totalorder 1, %s8
    %p133 = scmp.lt.s32.totalorder %s8, 3
    %p134 = pnand %p132, %p133
    %p135 = pneg %p134
    // Predicated region
    $region25: #{roberta_prompt_forward.14} parent=5 // pred_check
      _
    $region26: #{roberta_prompt_forward.14} parent=5 // pred_check_branch
      %137 = sbr.rel (%p134) target = $region28
    $region27: #{roberta_prompt_forward.14} parent=5 // pred_region
      %s138 = ssub.s32 %s8, 1
      %p139 = scmp.lt.s32.totalorder %s17, 1
      %s140 = scalar_select %p139, %s17, 1
      %s141 = smul.addr %s140, 4
      %s142 = scalar_lea.vmem %s0, %s141
      %p143 = pneg %p46
      %p144 = pneg %p43
      %p145 = scmp.lt.s32.totalorder %s17, 1
      %s146 = scalar_select %p145, %s17, 1
      %s147 = scalar_lea.vmem %s1, %s146
      %p148 = pneg %p72
      %p149 = pneg %p69
      %p150 = pneg %p100
      %p151 = pneg %p97
      %p152 = scmp.lt.s32.totalorder %s17, 1
      %s153 = scalar_select %p152, %s17, 1
      %p154 = scmp.lt.s32.totalorder %s18, 0
      %s155 = scalar_select %p154, %s18, 0
      %s156 = sadd.s32 %s155, %s153
      %s157 = smul.addr %s156, 4
      %s158 = scalar_lea.vmem %s2, %s157
      %p159 = scmp.lt.s32.totalorder %s17, 1
      %s160 = scalar_select %p159, %s17, 1
      %s161 = smul.addr %s160, 4
      %s162 = scalar_lea.vmem %s0, %s161
      %p163 = scmp.lt.s32.totalorder %s17, 1
      %s164 = scalar_select %p163, %s17, 1
      %s165 = scalar_lea.vmem %s1, %s164
      %p166 = scmp.lt.s32.totalorder %s17, 1
      %s167 = scalar_select %p166, %s17, 1
      %p168 = scmp.lt.s32.totalorder %s18, 0
      %s169 = scalar_select %p168, %s18, 0
      %s170 = sadd.s32 %s169, %s167
      %s171 = smul.addr %s170, 4
      %s172 = scalar_lea.vmem %s2, %s171
      %s175 = smul.u32 %s18, 8
      %p176 = scmp.eq.s32.totalorder %s18, 0
      // Predicated region
      $region29: #{roberta_prompt_forward.14} parent=27 // pred_check
        %p177 = pneg %p176
      $region30: #{roberta_prompt_forward.14} parent=27 // pred_check_branch
        %179 = sbr.rel (%p177) target = $region32
      $region31: #{roberta_prompt_forward.14} parent=27 // pred_region
        %v180 = vld [vmem:[%s162] sm:$0xf]
        %v182 = vunpack.c.l.b16 %v180
        %v183 = vpack.c.b16 %v182, %v182
        %184 = vrot.lane.b32.xlu0 %v183, 96
        %v185 = vpop.permute.xlu0 %184
        %187 = vxpose.xlu0.c.b16.start [1/8] %v185, 128
        %188 = vxpose.xlu0.c.b16.cont [2/8] 0, 128
        %189 = vxpose.xlu0.c.b16.cont [3/8] 0, 128
        %190 = vxpose.xlu0.c.b16.cont [4/8] 0, 128
        %191 = vxpose.xlu0.c.b16.cont [5/8] 0, 128
        %192 = vxpose.xlu0.c.b16.cont [6/8] 0, 128
        %193 = vxpose.xlu0.c.b16.cont [7/8] 0, 128
        %194 = vxpose.xlu0.c.b16.end [8/8] 0, 128
        %v195 = vpop.trf.xlu0
        %v196 = vpop.trf.xlu0
        %v197 = vpop.trf.xlu0
        %v198 = vpop.trf.xlu0
        %v199 = vpop.trf.xlu0
        %v200 = vpop.trf.xlu0
        %v201 = vpop.trf.xlu0
        %v202 = vpop.trf.xlu0
        %vm203 = vcmask 64512
        %204 = vst.msk [vmem:[#allocation2] sm:$0xff] %vm203, %v195
        %205 = vst.msk [vmem:[#allocation2 + $0x8] sm:$0xff] %vm203, %v196
      $region32: #{roberta_prompt_forward.14} parent=27 // pred_fallthru
        _
      %v206 = vld [vmem:[%s165] sm:$0x1]
      %v207 = vsub.f32 %v206, 1.0
      %v208 = vmul.f32 %v207, 1e+09
      %s209 = sshra.s32 %s175, 3
      %s210 = sand.u32 %s175, 7
      %s211 = smul.addr %s209, 4
      %s212 = scalar_lea.vmem %s162, %s211
      %v213 = vld [vmem:[%s212] sm:$0xf]
      %v214 = vmul.bf16 %v213, 1048592000
      %v215 = vld [vmem:[#allocation2] sm:$0xff]
      %v216 = vld [vmem:[%s162] sm:$0xf]
      %v218 = vlaneseq
      %v219 = vshrl.u32 %v218, 7
      %v220 = vsub.s32 0, %v219
      %v221 = vrot.slane %v208, %v220
      %vm223 = vcmask 130048
      %v225 = vsel %vm223, %v214, 0
      %227 = vmatprep.subr.bf16.mxu0 0
      %228 = vmatpush1.bf16.msra.mxu0 %v215
      %229 = vmatprep.subr.bf16.mxu0 0
      %230 = vmatpush1.bf16.msra.mxu0 0
      %231 = vmatprep.subr.bf16.mxu0 0
      %232 = vmatpush1.bf16.msra.mxu0 0
      %233 = vmatprep.subr.bf16.mxu0 0
      %234 = vmatpush1.bf16.msra.mxu0 0
      %235 = vmatprep.subr.bf16.mxu0 0
      %236 = vmatpush1.bf16.msra.mxu0 0
      %237 = vmatprep.subr.bf16.mxu0 0
      %238 = vmatpush1.bf16.msra.mxu0 0
      %239 = vmatprep.subr.bf16.mxu0 0
      %240 = vmatpush1.bf16.msra.mxu0 0
      %241 = vmatprep.subr.bf16.mxu0 0
      %242 = vmatpush1.bf16.msra.mxu0 0
      %243 = vmatprep.subr.bf16.mxu0 0
      %244 = vmatpush1.bf16.msra.mxu0 0
      %245 = vmatprep.subr.bf16.mxu0 0
      %246 = vmatpush1.bf16.msra.mxu0 0
      %247 = vmatprep.subr.bf16.mxu0 0
      %248 = vmatpush1.bf16.msra.mxu0 0
      %249 = vmatprep.subr.bf16.mxu0 0
      %250 = vmatpush1.bf16.msra.mxu0 0
      %251 = vmatprep.subr.bf16.mxu0 0
      %252 = vmatpush1.bf16.msra.mxu0 0
      %253 = vmatprep.subr.bf16.mxu0 0
      %254 = vmatpush1.bf16.msra.mxu0 0
      %255 = vmatprep.subr.bf16.mxu0 0
      %256 = vmatpush1.bf16.msra.mxu0 0
      %257 = vmatprep.subr.bf16.mxu0 0
      %258 = vmatpush1.bf16.msra.mxu0 0
      %259 = vmatprep.mubr.bf16.mxu0 0
      %260 = vmatmul.mubr.bf16.gmra.mrb[0].mxu0 %v225
      %v261 = vpop.f32.mrb[0].mxu0
      %v262 = vadd.f32 %v221, %v261
      %v263 = vpop.f32.mrb[0].mxu0
      %v264 = vpop.f32.mrb[0].mxu0
      %v265 = vpop.f32.mrb[0].mxu0
      %266 = vdwg.mxu0
      %vm267 = vcmask 64512
      %v268 = vsel %vm267, %v262, -inf
      %269 = vmax.xlane.f32.xlu0 %v268
      %v270 = vpop.xlane.xlu0 %269
      %v271 = vsub.f32 %v262, %v270
      %v272 = vmul.f32 %v271, 1.442695
      %v273 = vpow.pop %v272
      %v274 = vsel %vm267, %v273, 0.0
      %275 = vadd.xlane.f32.xlu0 %v274
      %v276 = vpop.xlane.xlu0 %275
      %v277 = vpack.c.bf16 %v273, %v273
      %v279 = vunpack.c.l.b16 %v216
      %v280 = vpack.c.b16 %v279, %v279
      %281 = vrot.lane.b32.xlu0 %v280, 64
      %v282 = vpop.permute.xlu0 %281
      %v284 = vsel %vm267, %v277, 0
      %vm286 = vcmask 1043456
      %v288 = vsel %vm286, %v282, 0
      %290 = vmatprep.subr.bf16.mxu0 0
      %291 = vmatpush1.bf16.msra.mxu0 %v288
      %292 = vmatprep.subr.bf16.mxu0 0
      %293 = vmatpush1.bf16.msra.mxu0 0
      %294 = vmatprep.subr.bf16.mxu0 0
      %295 = vmatpush1.bf16.msra.mxu0 0
      %296 = vmatprep.subr.bf16.mxu0 0
      %297 = vmatpush1.bf16.msra.mxu0 0
      %298 = vmatprep.subr.bf16.mxu0 0
      %299 = vmatpush1.bf16.msra.mxu0 0
      %300 = vmatprep.subr.bf16.mxu0 0
      %301 = vmatpush1.bf16.msra.mxu0 0
      %302 = vmatprep.subr.bf16.mxu0 0
      %303 = vmatpush1.bf16.msra.mxu0 0
      %304 = vmatprep.subr.bf16.mxu0 0
      %305 = vmatpush1.bf16.msra.mxu0 0
      %306 = vmatprep.subr.bf16.mxu0 0
      %307 = vmatpush1.bf16.msra.mxu0 0
      %308 = vmatprep.subr.bf16.mxu0 0
      %309 = vmatpush1.bf16.msra.mxu0 0
      %310 = vmatprep.subr.bf16.mxu0 0
      %311 = vmatpush1.bf16.msra.mxu0 0
      %312 = vmatprep.subr.bf16.mxu0 0
      %313 = vmatpush1.bf16.msra.mxu0 0
      %314 = vmatprep.subr.bf16.mxu0 0
      %315 = vmatpush1.bf16.msra.mxu0 0
      %316 = vmatprep.subr.bf16.mxu0 0
      %317 = vmatpush1.bf16.msra.mxu0 0
      %318 = vmatprep.subr.bf16.mxu0 0
      %319 = vmatpush1.bf16.msra.mxu0 0
      %320 = vmatprep.subr.bf16.mxu0 0
      %321 = vmatpush1.bf16.msra.mxu0 0
      %322 = vmatprep.mubr.bf16.mxu0 0
      %323 = vmatmul.mubr.bf16.gmra.mrb[0].mxu0 %v284
      %v324 = vpop.f32.mrb[0].mxu0
      %v325 = vadd.f32 0.0, %v324
      %v326 = vpop.f32.mrb[0].mxu0
      %v327 = vpop.f32.mrb[0].mxu0
      %v328 = vpop.f32.mrb[0].mxu0
      %329 = vdwg.mxu0
      %v330 = vrcp.pop %v276
      %v331 = vmul.f32 %v325, %v330
      %v332 = vpack.c.bf16 %v331, %v331
      %v333 = vld [vmem:[#allocation2 + $0x8] sm:$0xff]
      %v335 = vunpack.c.l.b16 %v214
      %v336 = vpack.c.b16 %v335, %v335
      %337 = vrot.lane.b32.xlu0 %v336, 112
      %v338 = vpop.permute.xlu0 %337
      %v340 = vsel %vm223, %v338, 0
      %342 = vmatprep.subr.bf16.mxu0 0
      %343 = vmatpush1.bf16.msra.mxu0 %v333
      %344 = vmatprep.subr.bf16.mxu0 0
      %345 = vmatpush1.bf16.msra.mxu0 0
      %346 = vmatprep.subr.bf16.mxu0 0
      %347 = vmatpush1.bf16.msra.mxu0 0
      %348 = vmatprep.subr.bf16.mxu0 0
      %349 = vmatpush1.bf16.msra.mxu0 0
      %350 = vmatprep.subr.bf16.mxu0 0
      %351 = vmatpush1.bf16.msra.mxu0 0
      %352 = vmatprep.subr.bf16.mxu0 0
      %353 = vmatpush1.bf16.msra.mxu0 0
      %354 = vmatprep.subr.bf16.mxu0 0
      %355 = vmatpush1.bf16.msra.mxu0 0
      %356 = vmatprep.subr.bf16.mxu0 0
      %357 = vmatpush1.bf16.msra.mxu0 0
      %358 = vmatprep.subr.bf16.mxu0 0
      %359 = vmatpush1.bf16.msra.mxu0 0
      %360 = vmatprep.subr.bf16.mxu0 0
      %361 = vmatpush1.bf16.msra.mxu0 0
      %362 = vmatprep.subr.bf16.mxu0 0
      %363 = vmatpush1.bf16.msra.mxu0 0
      %364 = vmatprep.subr.bf16.mxu0 0
      %365 = vmatpush1.bf16.msra.mxu0 0
      %366 = vmatprep.subr.bf16.mxu0 0
      %367 = vmatpush1.bf16.msra.mxu0 0
      %368 = vmatprep.subr.bf16.mxu0 0
      %369 = vmatpush1.bf16.msra.mxu0 0
      %370 = vmatprep.subr.bf16.mxu0 0
      %371 = vmatpush1.bf16.msra.mxu0 0
      %372 = vmatprep.subr.bf16.mxu0 0
      %373 = vmatpush1.bf16.msra.mxu0 0
      %374 = vmatprep.mubr.bf16.mxu0 0
      %375 = vmatmul.mubr.bf16.gmra.mrb[0].mxu0 %v340
      %v376 = vpop.f32.mrb[0].mxu0
      %v377 = vadd.f32 %v221, %v376
      %v378 = vpop.f32.mrb[0].mxu0
      %v379 = vpop.f32.mrb[0].mxu0
      %v380 = vpop.f32.mrb[0].mxu0
      %381 = vdwg.mxu0
      %v382 = vsel %vm267, %v377, -inf
      %383 = vmax.xlane.f32.xlu0 %v382
      %v384 = vpop.xlane.xlu0 %383
      %v385 = vsub.f32 %v377, %v384
      %v386 = vmul.f32 %v385, 1.442695
      %v387 = vpow.pop %v386
      %v388 = vsel %vm267, %v387, 0.0
      %389 = vadd.xlane.f32.xlu0 %v388
      %v390 = vpop.xlane.xlu0 %389
      %v391 = vpack.c.bf16 %v387, %v387
      %392 = vrot.lane.b32.xlu0 %v280, 48
      %v393 = vpop.permute.xlu0 %392
      %v395 = vsel %vm267, %v391, 0
      %v398 = vsel %vm286, %v393, 0
      %400 = vmatprep.subr.bf16.mxu0 0
      %401 = vmatpush1.bf16.msra.mxu0 %v398
      %402 = vmatprep.subr.bf16.mxu0 0
      %403 = vmatpush1.bf16.msra.mxu0 0
      %404 = vmatprep.subr.bf16.mxu0 0
      %405 = vmatpush1.bf16.msra.mxu0 0
      %406 = vmatprep.subr.bf16.mxu0 0
      %407 = vmatpush1.bf16.msra.mxu0 0
      %408 = vmatprep.subr.bf16.mxu0 0
      %409 = vmatpush1.bf16.msra.mxu0 0
      %410 = vmatprep.subr.bf16.mxu0 0
      %411 = vmatpush1.bf16.msra.mxu0 0
      %412 = vmatprep.subr.bf16.mxu0 0
      %413 = vmatpush1.bf16.msra.mxu0 0
      %414 = vmatprep.subr.bf16.mxu0 0
      %415 = vmatpush1.bf16.msra.mxu0 0
      %416 = vmatprep.subr.bf16.mxu0 0
      %417 = vmatpush1.bf16.msra.mxu0 0
      %418 = vmatprep.subr.bf16.mxu0 0
      %419 = vmatpush1.bf16.msra.mxu0 0
      %420 = vmatprep.subr.bf16.mxu0 0
      %421 = vmatpush1.bf16.msra.mxu0 0
      %422 = vmatprep.subr.bf16.mxu0 0
      %423 = vmatpush1.bf16.msra.mxu0 0
      %424 = vmatprep.subr.bf16.mxu0 0
      %425 = vmatpush1.bf16.msra.mxu0 0
      %426 = vmatprep.subr.bf16.mxu0 0
      %427 = vmatpush1.bf16.msra.mxu0 0
      %428 = vmatprep.subr.bf16.mxu0 0
      %429 = vmatpush1.bf16.msra.mxu0 0
      %430 = vmatprep.subr.bf16.mxu0 0
      %431 = vmatpush1.bf16.msra.mxu0 0
      %432 = vmatprep.mubr.bf16.mxu0 0
      %433 = vmatmul.mubr.bf16.gmra.mrb[0].mxu0 %v395
      %v434 = vpop.f32.mrb[0].mxu0
      %v435 = vadd.f32 0.0, %v434
      %v436 = vpop.f32.mrb[0].mxu0
      %v437 = vpop.f32.mrb[0].mxu0
      %v438 = vpop.f32.mrb[0].mxu0
      %439 = vdwg.mxu0
      %v440 = vrcp.pop %v390
      %v441 = vmul.f32 %v435, %v440
      %v442 = vpack.c.bf16 %v441, %v441
      %444 = vrot.lane.b32.xlu0 %v442, 16
      %v445 = vpop.permute.xlu0 %444
      %v448 = vsel %vm223, %v332, %v445
      %vm450 = vcmask 257024
      %451 = vst.msk [vmem:[%s172] sm:$0xf] %vm450, %v448
      %p452 = scmp.lt.s32.totalorder %s17, 1
      %s453 = scalar_select %p452, %s17, 1
      %p454 = scmp.lt.s32.totalorder %s18, 0
      %s455 = scalar_select %p454, %s18, 0
      %s456 = sadd.s32 %s455, %s453
      %s457 = smul.addr %s456, 4
      %s458 = scalar_lea.vmem %s2, %s457
      // Predicated region
      $region33: #{roberta_prompt_forward.14} parent=27 // pred_check
        %p459 = pneg %p97
      $region34: #{roberta_prompt_forward.14} parent=27 // pred_check_branch
        %461 = sbr.rel (%p459) target = $region36
      $region35: #{roberta_prompt_forward.14} parent=27 // pred_region
        _
      $region36: #{roberta_prompt_forward.14} parent=27 // pred_fallthru
        _
    $region28: #{roberta_prompt_forward.14} parent=5 // pred_fallthru
      _
    %p462 = scmp.le.s32.totalorder 2, %s8
    // Predicated region
    $region37: #{roberta_prompt_forward.14} parent=5 // pred_check
      %p463 = pneg %p462
    $region38: #{roberta_prompt_forward.14} parent=5 // pred_check_branch
      %465 = sbr.rel (%p463) target = $region40
    $region39: #{roberta_prompt_forward.14} parent=5 // pred_region
      %s466 = ssub.s32 %s8, 2
      // Predicated region
      $region41: #{roberta_prompt_forward.14} parent=39 // pred_check
        %p467 = pneg %p103
      $region42: #{roberta_prompt_forward.14} parent=39 // pred_check_branch
        %469 = sbr.rel (%p467) target = $region44
      $region43: #{roberta_prompt_forward.14} parent=39 // pred_region
        %p470 = scmp.lt.s32.totalorder %s19, 1
        %s471 = scalar_select %p470, %s19, 1
        %p472 = scmp.lt.s32.totalorder %s20, 0
        %s473 = scalar_select %p472, %s20, 0
        %s474 = sadd.s32 %s473, %s471
        %s475 = smul.addr %s474, 4
        %s476 = scalar_lea.vmem %s2, %s475
      $region44: #{roberta_prompt_forward.14} parent=39 // pred_fallthru
        _
    $region40: #{roberta_prompt_forward.14} parent=5 // pred_fallthru
      _
  $region6: #{roberta_prompt_forward.14} parent=0 // loop_footer
    %s12 = sadd.s32 1, %s8
  $region7: #{roberta_prompt_forward.14} parent=0 // loop_footer_branch
    %7 = sbr.rel target = $region3
  $region8: #{roberta_prompt_forward.14} parent=0 // loop_exit
    _

// kernel: roberta_prompt_forward.16
$region0: #{roberta_prompt_forward.16}
  #allocation0 [shape = 'u32[]', space=smem, size = 0x4, offset = 0x4, fixed_abs, tag = 'smem constant byte address 0x4 - core index']
  #allocation1 [shape = 'u32[144,128]{1,0:T(1,128)}', space=vmem, size = 0x12000, scoped, tag = 'internal scratch']
  #allocation2 [shape = 'f32[16,64]{1,0:T(8,128)}', space=vmem, size = 0x2000, scoped, tag = 'scratch operand']
  %s0 = inlined_call_operand.vmem [shape: bf16[16,32], index: 0, kind: input, shape index: {}]
  %s1 = inlined_call_operand.vmem [shape: bf16[32,64], index: 1, kind: input, shape index: {}]
  %s2 = inlined_call_operand.vmem [shape: bf16[1,64], index: 2, kind: input, shape index: {}]
  %s3 = inlined_call_operand.vmem [shape: bf16[16,64], index: 3, kind: output, shape index: {}]
  %s4 = sld [smem:[#allocation0]]
  $region30: #{roberta_prompt_forward.16} parent=0
    _
  %s6 = ssub.s32 1, %s4
  %s7 = scalar_select 0, %s6, %s4
  // Predicated region
  $region2: #{roberta_prompt_forward.16} parent=0 // pred_check
    _
  $region3: #{roberta_prompt_forward.16} parent=0 // pred_check_branch
    %9 = sbr.rel (0) target = $region5
  $region4: #{roberta_prompt_forward.16} parent=0 // pred_region
    _
  $region5: #{roberta_prompt_forward.16} parent=0 // pred_fallthru
    _
  // Predicated region
  $region6: #{roberta_prompt_forward.16} parent=0 // pred_check
    _
  $region7: #{roberta_prompt_forward.16} parent=0 // pred_check_branch
    %11 = sbr.rel (0) target = $region9
  $region8: #{roberta_prompt_forward.16} parent=0 // pred_region
    _
  $region9: #{roberta_prompt_forward.16} parent=0 // pred_fallthru
    _
  // Predicated region
  $region10: #{roberta_prompt_forward.16} parent=0 // pred_check
    _
  $region11: #{roberta_prompt_forward.16} parent=0 // pred_check_branch
    %13 = sbr.rel (0) target = $region13
  $region12: #{roberta_prompt_forward.16} parent=0 // pred_region
    _
  $region13: #{roberta_prompt_forward.16} parent=0 // pred_fallthru
    _
  %p15 = scmp.eq.s32.totalorder 0, 0
  // Predicated region
  $region14: #{roberta_prompt_forward.16} parent=0 // pred_check
    %p16 = pneg %p15
  $region15: #{roberta_prompt_forward.16} parent=0 // pred_check_branch
    %18 = sbr.rel (%p16) target = $region17
  $region16: #{roberta_prompt_forward.16} parent=0 // pred_region
    %vm19 = vcmask 523264
    %20 = vst.msk [vmem:[#allocation2] sm:$0xff] %vm19, 0.0
    %21 = vst.msk [vmem:[#allocation2 + $0x8] sm:$0xff] %vm19, 0.0
  $region17: #{roberta_prompt_forward.16} parent=0 // pred_fallthru
    _
  %v22 = vld [vmem:[#allocation2] sm:$0xff]
  %v23 = vld [vmem:[#allocation2 + $0x8] sm:$0xff]
  %v24 = vld [vmem:[%s0] sm:$0xf]
  %v25 = vld [vmem:[%s0 + $0x4] sm:$0xf]
  %v26 = vld [vmem:[%s1] sm:$0xf]
  %v27 = vld [vmem:[%s1 + $0x4] sm:$0xf]
  %v28 = vld [vmem:[%s1 + $0x8] sm:$0xf]
  %v29 = vld [vmem:[%s1 + $0xc] sm:$0xf]
  %v32 = vunpack.c.l.b16 %v24
  %v33 = vunpack.c.l.b16 %v25
  %v34 = vpack.c.b16 %v33, %v32
  %v39 = vunpack.c.l.b16 %v26
  %v40 = vunpack.c.l.b16 %v27
  %v41 = vunpack.c.l.b16 %v28
  %v42 = vunpack.c.l.b16 %v29
  %v43 = vpack.c.b16 %v40, %v39
  %v44 = vpack.c.b16 %v42, %v41
  %vm47 = vcmask 261120
  %v49 = vsel %vm47, %v34, 0
  %51 = vmatprep.subr.bf16.mxu0 0
  %52 = vmatpush1.bf16.msra.mxu0 %v43
  %53 = vmatprep.subr.bf16.mxu0 0
  %54 = vmatpush1.bf16.msra.mxu0 %v44
  %55 = vmatprep.subr.bf16.mxu0 0
  %56 = vmatpush1.bf16.msra.mxu0 0
  %57 = vmatprep.subr.bf16.mxu0 0
  %58 = vmatpush1.bf16.msra.mxu0 0
  %59 = vmatprep.subr.bf16.mxu0 0
  %60 = vmatpush1.bf16.msra.mxu0 0
  %61 = vmatprep.subr.bf16.mxu0 0
  %62 = vmatpush1.bf16.msra.mxu0 0
  %63 = vmatprep.subr.bf16.mxu0 0
  %64 = vmatpush1.bf16.msra.mxu0 0
  %65 = vmatprep.subr.bf16.mxu0 0
  %66 = vmatpush1.bf16.msra.mxu0 0
  %67 = vmatprep.subr.bf16.mxu0 0
  %68 = vmatpush1.bf16.msra.mxu0 0
  %69 = vmatprep.subr.bf16.mxu0 0
  %70 = vmatpush1.bf16.msra.mxu0 0
  %71 = vmatprep.subr.bf16.mxu0 0
  %72 = vmatpush1.bf16.msra.mxu0 0
  %73 = vmatprep.subr.bf16.mxu0 0
  %74 = vmatpush1.bf16.msra.mxu0 0
  %75 = vmatprep.subr.bf16.mxu0 0
  %76 = vmatpush1.bf16.msra.mxu0 0
  %77 = vmatprep.subr.bf16.mxu0 0
  %78 = vmatpush1.bf16.msra.mxu0 0
  %79 = vmatprep.subr.bf16.mxu0 0
  %80 = vmatpush1.bf16.msra.mxu0 0
  %81 = vmatprep.subr.bf16.mxu0 0
  %82 = vmatpush1.bf16.msra.mxu0 0
  %83 = vmatprep.mubr.bf16.mxu0 0
  %84 = vmatmul.mubr.bf16.gmra.mrb[0].mxu0 %v49
  %v85 = vpop.f32.mrb[0].mxu0
  %v86 = vadd.f32 0.0, %v85
  %v87 = vpop.f32.mrb[0].mxu0
  %v88 = vpop.f32.mrb[0].mxu0
  %v89 = vadd.f32 0.0, %v88
  %v90 = vpop.f32.mrb[0].mxu0
  %91 = vdwg.mxu0
  %v92 = vadd.f32 %v22, %v86
  %v93 = vadd.f32 %v23, %v89
  %vm94 = vcmask 523264
  %95 = vst.msk [vmem:[#allocation2] sm:$0xff] %vm94, %v92
  %96 = vst.msk [vmem:[#allocation2 + $0x8] sm:$0xff] %vm94, %v93
  // Predicated region
  $region18: #{roberta_prompt_forward.16} parent=0 // pred_check
    %p97 = pneg %p15
  $region19: #{roberta_prompt_forward.16} parent=0 // pred_check_branch
    %99 = sbr.rel (%p97) target = $region21
  $region20: #{roberta_prompt_forward.16} parent=0 // pred_region
    %v100 = vld [vmem:[#allocation2] sm:$0xff]
    %v101 = vld [vmem:[#allocation2 + $0x8] sm:$0xff]
    %v102 = vld [vmem:[%s2] sm:$0x1]
    %v103 = vunpack.c.l.bf16 %v102
    %v104 = vlaneseq
    %v105 = vshrl.u32 %v104, 7
    %v106 = vsub.s32 0, %v105
    %v107 = vrot.slane %v103, %v106
    %v108 = vadd.f32 %v100, %v107
    %v109 = vadd.f32 %v101, %v107
    %v110 = vmul.f32 %v108, %v108
    %v111 = vmul.f32 %v109, %v109
    %v112 = vmul.f32 %v108, %v110
    %v113 = vmul.f32 %v109, %v111
    %v114 = vmul.f32 %v112, 0.044715
    %v115 = vmul.f32 %v113, 0.044715
    %v116 = vadd.f32 %v108, %v114
    %v117 = vadd.f32 %v109, %v115
    %v118 = vmul.f32 %v116, 0.7978846
    %v119 = vmul.f32 %v117, 0.7978846
    %v120 = vtanh.pop %v118
    %v121 = vtanh.pop %v119
    %v122 = vadd.f32 %v120, 1.0
    %v123 = vadd.f32 %v121, 1.0
    %v124 = vmul.f32 %v122, 0.5
    %v125 = vmul.f32 %v123, 0.5
    %v126 = vmul.f32 %v108, %v124
    %v127 = vmul.f32 %v109, %v125
    %v128 = vpack.c.bf16 %v127, %v126
    %v130 = vunpack.c.l.b16 %v128
    %v131 = vunpack.c.h.b16 %v128
    %v132 = vpack.c.b16 %v130, %v130
    %v133 = vpack.c.b16 %v131, %v131
    %vm136 = vcmask 519168
    %137 = vst.msk [vmem:[%s3] sm:$0xf] %vm136, %v132
    %138 = vst.msk [vmem:[%s3 + $0x4] sm:$0xf] %vm136, %v133
  $region21: #{roberta_prompt_forward.16} parent=0 // pred_fallthru
    _
  // Predicated region
  $region22: #{roberta_prompt_forward.16} parent=0 // pred_check
    _
  $region23: #{roberta_prompt_forward.16} parent=0 // pred_check_branch
    %140 = sbr.rel (0) target = $region25
  $region24: #{roberta_prompt_forward.16} parent=0 // pred_region
    _
  $region25: #{roberta_prompt_forward.16} parent=0 // pred_fallthru
    _
  // Predicated region
  $region26: #{roberta_prompt_forward.16} parent=0 // pred_check
    _
  $region27: #{roberta_prompt_forward.16} parent=0 // pred_check_branch
    %142 = sbr.rel (0) target = $region29
  $region28: #{roberta_prompt_forward.16} parent=0 // pred_region
    _
  $region29: #{roberta_prompt_forward.16} parent=0 // pred_fallthru
    _

// kernel: roberta_prompt_forward.23
$region0: #{roberta_prompt_forward.23}
  #allocation0 [shape = 'u32[]', space=smem, size = 0x4, offset = 0x4, fixed_abs, tag = 'smem constant byte address 0x4 - core index']
  #allocation1 [shape = 'u32[144,128]{1,0:T(1,128)}', space=vmem, size = 0x12000, scoped, tag = 'internal scratch']
  %s0 = inlined_call_operand.vmem [shape: bf16[2,32], index: 0, kind: input, shape index: {}]
  %s1 = inlined_call_operand.vmem [shape: bf16[32,32], index: 1, kind: input, shape index: {}]
  %s2 = inlined_call_operand.vmem [shape: bf16[1,32], index: 2, kind: input, shape index: {}]
  %s3 = inlined_call_operand.vmem [shape: f32[1,32], index: 3, kind: input, shape index: {}]
  %s4 = inlined_call_operand.vmem [shape: f32[1,32], index: 4, kind: input, shape index: {}]
  %s5 = inlined_call_operand.vmem [shape: bf16[32,128], index: 5, kind: input, shape index: {}]
  %s6 = inlined_call_operand.vmem [shape: bf16[1,128], index: 6, kind: input, shape index: {}]
  %s7 = inlined_call_operand.hbm [shape: f32[2,128], index: 7, kind: output, shape index: {}]
  %s8 = sld [smem:[#allocation0]]
  $region38: #{roberta_prompt_forward.23} parent=0
    _
  %s10 = ssub.s32 1, %s8
  %s11 = scalar_select 0, %s10, %s8
  $region1: #{roberta_prompt_forward.23} parent=0
    #allocation2 [shape = 'u8[1024]{0}', space=vmem, size = 0x400, scoped, tag = 'output window, operand 0, single buffered']
    #allocation3 [shape = 's32[1]{0}', space=sflag, size = 0x4, scoped, tag = 'scoped memory for roberta_prompt_forward.23']
    %12 = vsyncpa [#allocation3], 0
    // Predicated region
    $region2: #{roberta_prompt_forward.23} parent=1 // pred_check
      _
    $region3: #{roberta_prompt_forward.23} parent=1 // pred_check_branch
      %14 = sbr.rel (0) target = $region5
    $region4: #{roberta_prompt_forward.23} parent=1 // pred_region
      _
    $region5: #{roberta_prompt_forward.23} parent=1 // pred_fallthru
      _
    // Predicated region
    $region6: #{roberta_prompt_forward.23} parent=1 // pred_check
      _
    $region7: #{roberta_prompt_forward.23} parent=1 // pred_check_branch
      %16 = sbr.rel (0) target = $region9
    $region8: #{roberta_prompt_forward.23} parent=1 // pred_region
      _
    $region9: #{roberta_prompt_forward.23} parent=1 // pred_fallthru
      _
    // Predicated region
    $region10: #{roberta_prompt_forward.23} parent=1 // pred_check
      _
    $region11: #{roberta_prompt_forward.23} parent=1 // pred_check_branch
      %18 = sbr.rel (0) target = $region13
    $region12: #{roberta_prompt_forward.23} parent=1 // pred_region
      _
    $region13: #{roberta_prompt_forward.23} parent=1 // pred_fallthru
      _
    // Predicated region
    $region14: #{roberta_prompt_forward.23} parent=1 // pred_check
      _
    $region15: #{roberta_prompt_forward.23} parent=1 // pred_check_branch
      %20 = sbr.rel (0) target = $region17
    $region16: #{roberta_prompt_forward.23} parent=1 // pred_region
      _
    $region17: #{roberta_prompt_forward.23} parent=1 // pred_fallthru
      _
    // Predicated region
    $region18: #{roberta_prompt_forward.23} parent=1 // pred_check
      _
    $region19: #{roberta_prompt_forward.23} parent=1 // pred_check_branch
      %22 = sbr.rel (0) target = $region21
    $region20: #{roberta_prompt_forward.23} parent=1 // pred_region
      _
    $region21: #{roberta_prompt_forward.23} parent=1 // pred_fallthru
      _
    // Predicated region
    $region22: #{roberta_prompt_forward.23} parent=1 // pred_check
      _
    $region23: #{roberta_prompt_forward.23} parent=1 // pred_check_branch
      %24 = sbr.rel (0) target = $region25
    $region24: #{roberta_prompt_forward.23} parent=1 // pred_region
      _
    $region25: #{roberta_prompt_forward.23} parent=1 // pred_fallthru
      _
    // Predicated region
    $region26: #{roberta_prompt_forward.23} parent=1 // pred_check
      _
    $region27: #{roberta_prompt_forward.23} parent=1 // pred_check_branch
      %26 = sbr.rel (0) target = $region29
    $region28: #{roberta_prompt_forward.23} parent=1 // pred_region
      _
    $region29: #{roberta_prompt_forward.23} parent=1 // pred_fallthru
      _
    %v28 = vld [vmem:[%s0] sm:$0x1]
    %v29 = vld [vmem:[%s1] sm:$0xf]
    %v30 = vld [vmem:[%s1 + $0x4] sm:$0xf]
    %v31 = vld [vmem:[%s1 + $0x8] sm:$0xf]
    %v32 = vld [vmem:[%s1 + $0xc] sm:$0xf]
    %v33 = vld [vmem:[%s2] sm:$0x1]
    %v34 = vunpack.c.l.bf16 %v33
    %v35 = vlaneseq
    %v36 = vshrl.u32 %v35, 7
    %v37 = vsub.s32 0, %v36
    %v38 = vrot.slane %v34, %v37
    %v43 = vunpack.c.l.b16 %v29
    %v44 = vunpack.c.l.b16 %v30
    %v45 = vunpack.c.l.b16 %v31
    %v46 = vunpack.c.l.b16 %v32
    %v47 = vpack.c.b16 %v44, %v43
    %v48 = vpack.c.b16 %v46, %v45
    %vm51 = vcmask 261120
    %v53 = vsel %vm51, %v28, 0
    %55 = vmatprep.subr.bf16.mxu0 0
    %56 = vmatpush1.bf16.msra.mxu0 %v47
    %57 = vmatprep.subr.bf16.mxu0 0
    %58 = vmatpush1.bf16.msra.mxu0 %v48
    %59 = vmatprep.subr.bf16.mxu0 0
    %60 = vmatpush1.bf16.msra.mxu0 0
    %61 = vmatprep.subr.bf16.mxu0 0
    %62 = vmatpush1.bf16.msra.mxu0 0
    %63 = vmatprep.subr.bf16.mxu0 0
    %64 = vmatpush1.bf16.msra.mxu0 0
    %65 = vmatprep.subr.bf16.mxu0 0
    %66 = vmatpush1.bf16.msra.mxu0 0
    %67 = vmatprep.subr.bf16.mxu0 0
    %68 = vmatpush1.bf16.msra.mxu0 0
    %69 = vmatprep.subr.bf16.mxu0 0
    %70 = vmatpush1.bf16.msra.mxu0 0
    %71 = vmatprep.subr.bf16.mxu0 0
    %72 = vmatpush1.bf16.msra.mxu0 0
    %73 = vmatprep.subr.bf16.mxu0 0
    %74 = vmatpush1.bf16.msra.mxu0 0
    %75 = vmatprep.subr.bf16.mxu0 0
    %76 = vmatpush1.bf16.msra.mxu0 0
    %77 = vmatprep.subr.bf16.mxu0 0
    %78 = vmatpush1.bf16.msra.mxu0 0
    %79 = vmatprep.subr.bf16.mxu0 0
    %80 = vmatpush1.bf16.msra.mxu0 0
    %81 = vmatprep.subr.bf16.mxu0 0
    %82 = vmatpush1.bf16.msra.mxu0 0
    %83 = vmatprep.subr.bf16.mxu0 0
    %84 = vmatpush1.bf16.msra.mxu0 0
    %85 = vmatprep.subr.bf16.mxu0 0
    %86 = vmatpush1.bf16.msra.mxu0 0
    %87 = vmatprep.mubr.bf16.mxu0 0
    %88 = vmatmul.mubr.bf16.gmra.mrb[0].mxu0 %v53
    %v89 = vpop.f32.mrb[0].mxu0
    %v90 = vadd.f32 %v38, %v89
    %v91 = vpop.f32.mrb[0].mxu0
    %v92 = vpop.f32.mrb[0].mxu0
    %v93 = vpop.f32.mrb[0].mxu0
    %94 = vdwg.mxu0
    %v95 = vmul.f32 %v90, %v90
    %v96 = vmul.f32 %v90, %v95
    %v97 = vmul.f32 %v96, 0.044715
    %v98 = vadd.f32 %v90, %v97
    %v99 = vmul.f32 %v98, 0.7978846
    %v100 = vtanh.pop %v99
    %v101 = vadd.f32 %v100, 1.0
    %v102 = vmul.f32 %v101, 0.5
    %v103 = vmul.f32 %v90, %v102
    %vm104 = vcmask 254976
    %v105 = vsel %vm104, %v103, 0.0
    %106 = vadd.xlane.f32.xlu0 %v105
    %v107 = vpop.xlane.xlu0 %106
    %v108 = vrcp.pop 32.0
    %v109 = vmul.f32 %v107, %v108
    %v110 = vsub.f32 %v103, %v109
    %v111 = vmul.f32 %v110, %v110
    %v112 = vsel %vm104, %v111, 0.0
    %113 = vadd.xlane.f32.xlu0 %v112
    %v114 = vpop.xlane.xlu0 %113
    %v115 = vmul.f32 %v114, %v108
    %v116 = vadd.f32 %v115, 1e-05
    %v117 = vrsqrt.pop %v116
    %v118 = vmul.f32 %v110, %v117
    %v119 = vld [vmem:[%s3] sm:$0x1]
    %v121 = vlaneseq
    %v122 = vshrl.u32 %v121, 7
    %v123 = vsub.s32 0, %v122
    %v124 = vrot.slane %v119, %v123
    %v126 = vmul.f32 %v118, %v124
    %v127 = vld [vmem:[%s4] sm:$0x1]
    %v129 = vlaneseq
    %v130 = vshrl.u32 %v129, 7
    %v131 = vsub.s32 0, %v130
    %v132 = vrot.slane %v127, %v131
    %v134 = vadd.f32 %v126, %v132
    %v135 = vpack.c.bf16 %v134, %v134
    %v136 = vld [vmem:[%s5] sm:$0xf]
    %v137 = vld [vmem:[%s5 + $0x4] sm:$0xf]
    %v138 = vld [vmem:[%s5 + $0x8] sm:$0xf]
    %v139 = vld [vmem:[%s5 + $0xc] sm:$0xf]
    %v140 = vld [vmem:[%s6] sm:$0x1]
    %v141 = vunpack.c.l.bf16 %v140
    %v142 = vlaneseq
    %v143 = vshrl.u32 %v142, 7
    %v144 = vsub.s32 0, %v143
    %v145 = vrot.slane %v141, %v144
    %v150 = vunpack.c.l.b16 %v136
    %v151 = vunpack.c.l.b16 %v137
    %v152 = vunpack.c.l.b16 %v138
    %v153 = vunpack.c.l.b16 %v139
    %v154 = vpack.c.b16 %v151, %v150
    %v155 = vpack.c.b16 %v153, %v152
    %v159 = vsel %vm51, %v135, 0
    %161 = vmatprep.subr.bf16.mxu0 0
    %162 = vmatpush1.bf16.msra.mxu0 %v154
    %163 = vmatprep.subr.bf16.mxu0 0
    %164 = vmatpush1.bf16.msra.mxu0 %v155
    %165 = vmatprep.subr.bf16.mxu0 0
    %166 = vmatpush1.bf16.msra.mxu0 0
    %167 = vmatprep.subr.bf16.mxu0 0
    %168 = vmatpush1.bf16.msra.mxu0 0
    %169 = vmatprep.subr.bf16.mxu0 0
    %170 = vmatpush1.bf16.msra.mxu0 0
    %171 = vmatprep.subr.bf16.mxu0 0
    %172 = vmatpush1.bf16.msra.mxu0 0
    %173 = vmatprep.subr.bf16.mxu0 0
    %174 = vmatpush1.bf16.msra.mxu0 0
    %175 = vmatprep.subr.bf16.mxu0 0
    %176 = vmatpush1.bf16.msra.mxu0 0
    %177 = vmatprep.subr.bf16.mxu0 0
    %178 = vmatpush1.bf16.msra.mxu0 0
    %179 = vmatprep.subr.bf16.mxu0 0
    %180 = vmatpush1.bf16.msra.mxu0 0
    %181 = vmatprep.subr.bf16.mxu0 0
    %182 = vmatpush1.bf16.msra.mxu0 0
    %183 = vmatprep.subr.bf16.mxu0 0
    %184 = vmatpush1.bf16.msra.mxu0 0
    %185 = vmatprep.subr.bf16.mxu0 0
    %186 = vmatpush1.bf16.msra.mxu0 0
    %187 = vmatprep.subr.bf16.mxu0 0
    %188 = vmatpush1.bf16.msra.mxu0 0
    %189 = vmatprep.subr.bf16.mxu0 0
    %190 = vmatpush1.bf16.msra.mxu0 0
    %191 = vmatprep.subr.bf16.mxu0 0
    %192 = vmatpush1.bf16.msra.mxu0 0
    %193 = vmatprep.mubr.bf16.mxu0 0
    %194 = vmatmul.mubr.bf16.gmra.mrb[0].mxu0 %v159
    %v195 = vpop.f32.mrb[0].mxu0
    %v196 = vadd.f32 %v145, %v195
    %v197 = vpop.f32.mrb[0].mxu0
    %v198 = vpop.f32.mrb[0].mxu0
    %v199 = vpop.f32.mrb[0].mxu0
    %200 = vdwg.mxu0
    %201 = vst [vmem:[#allocation2] sm:$0x3] %v196
    // Predicated region
    $region30: #{roberta_prompt_forward.23} parent=1 // pred_check
      _
    $region31: #{roberta_prompt_forward.23} parent=1 // pred_check_branch
      %203 = sbr.rel (0) target = $region33
    $region32: #{roberta_prompt_forward.23} parent=1 // pred_region
      %s205 = ssub.s32 32, 32
      %206 = vsyncadd [#allocation3], %s205
      %s208 = sshll.u32 [#allocation2], 4
      %s209 = int_to_ptr.vmem [resolvable:$true] %s208
      %211 = dma.vmem_to_hbm [thread:$0]  %s209, 32, %s7, [#allocation3]
    $region33: #{roberta_prompt_forward.23} parent=1 // pred_fallthru
      _
    // Predicated region
    $region34: #{roberta_prompt_forward.23} parent=1 // pred_check
      _
    $region35: #{roberta_prompt_forward.23} parent=1 // pred_check_branch
      %213 = sbr.rel (0) target = $region37
    $region36: #{roberta_prompt_forward.23} parent=1 // pred_region
      %214 = dma.done [#allocation3], 32
    $region37: #{roberta_prompt_forward.23} parent=1 // pred_fallthru
      _
    %215 = vsyncpa [#allocation3], 1

// kernel: roberta_prompt_forward.17
$region0: #{roberta_prompt_forward.17}
  #allocation0 [shape = 'u32[]', space=smem, size = 0x4, offset = 0x4, fixed_abs, tag = 'smem constant byte address 0x4 - core index']
  #allocation1 [shape = 'u32[144,128]{1,0:T(1,128)}', space=vmem, size = 0x12000, scoped, tag = 'internal scratch']
  #allocation2 [shape = 'f32[16,32]{1,0:T(8,128)}', space=vmem, size = 0x2000, scoped, tag = 'scratch operand']
  %s0 = inlined_call_operand.vmem [shape: bf16[16,64], index: 0, kind: input, shape index: {}]
  %s1 = inlined_call_operand.vmem [shape: bf16[64,32], index: 1, kind: input, shape index: {}]
  %s2 = inlined_call_operand.vmem [shape: bf16[1,32], index: 2, kind: input, shape index: {}]
  %s3 = inlined_call_operand.vmem [shape: bf16[16,32], index: 3, kind: input, shape index: {}]
  %s4 = inlined_call_operand.vmem [shape: f32[1,32], index: 4, kind: input, shape index: {}]
  %s5 = inlined_call_operand.vmem [shape: f32[1,32], index: 5, kind: input, shape index: {}]
  %s6 = inlined_call_operand.vmem [shape: bf16[16,32], index: 6, kind: output, shape index: {}]
  %s7 = sld [smem:[#allocation0]]
  $region42: #{roberta_prompt_forward.17} parent=0
    _
  %s9 = ssub.s32 1, %s7
  %s10 = scalar_select 0, %s9, %s7
  // Predicated region
  $region2: #{roberta_prompt_forward.17} parent=0 // pred_check
    _
  $region3: #{roberta_prompt_forward.17} parent=0 // pred_check_branch
    %12 = sbr.rel (0) target = $region5
  $region4: #{roberta_prompt_forward.17} parent=0 // pred_region
    _
  $region5: #{roberta_prompt_forward.17} parent=0 // pred_fallthru
    _
  // Predicated region
  $region6: #{roberta_prompt_forward.17} parent=0 // pred_check
    _
  $region7: #{roberta_prompt_forward.17} parent=0 // pred_check_branch
    %14 = sbr.rel (0) target = $region9
  $region8: #{roberta_prompt_forward.17} parent=0 // pred_region
    _
  $region9: #{roberta_prompt_forward.17} parent=0 // pred_fallthru
    _
  // Predicated region
  $region10: #{roberta_prompt_forward.17} parent=0 // pred_check
    _
  $region11: #{roberta_prompt_forward.17} parent=0 // pred_check_branch
    %16 = sbr.rel (0) target = $region13
  $region12: #{roberta_prompt_forward.17} parent=0 // pred_region
    _
  $region13: #{roberta_prompt_forward.17} parent=0 // pred_fallthru
    _
  // Predicated region
  $region14: #{roberta_prompt_forward.17} parent=0 // pred_check
    _
  $region15: #{roberta_prompt_forward.17} parent=0 // pred_check_branch
    %18 = sbr.rel (0) target = $region17
  $region16: #{roberta_prompt_forward.17} parent=0 // pred_region
    _
  $region17: #{roberta_prompt_forward.17} parent=0 // pred_fallthru
    _
  // Predicated region
  $region18: #{roberta_prompt_forward.17} parent=0 // pred_check
    _
  $region19: #{roberta_prompt_forward.17} parent=0 // pred_check_branch
    %20 = sbr.rel (0) target = $region21
  $region20: #{roberta_prompt_forward.17} parent=0 // pred_region
    _
  $region21: #{roberta_prompt_forward.17} parent=0 // pred_fallthru
    _
  // Predicated region
  $region22: #{roberta_prompt_forward.17} parent=0 // pred_check
    _
  $region23: #{roberta_prompt_forward.17} parent=0 // pred_check_branch
    %22 = sbr.rel (0) target = $region25
  $region24: #{roberta_prompt_forward.17} parent=0 // pred_region
    _
  $region25: #{roberta_prompt_forward.17} parent=0 // pred_fallthru
    _
  %p24 = scmp.eq.s32.totalorder 0, 0
  // Predicated region
  $region26: #{roberta_prompt_forward.17} parent=0 // pred_check
    %p25 = pneg %p24
  $region27: #{roberta_prompt_forward.17} parent=0 // pred_check_branch
    %27 = sbr.rel (%p25) target = $region29
  $region28: #{roberta_prompt_forward.17} parent=0 // pred_region
    %vm28 = vcmask 261120
    %29 = vst.msk [vmem:[#allocation2] sm:$0xff] %vm28, 0.0
    %30 = vst.msk [vmem:[#allocation2 + $0x8] sm:$0xff] %vm28, 0.0
  $region29: #{roberta_prompt_forward.17} parent=0 // pred_fallthru
    _
  %v31 = vld [vmem:[#allocation2] sm:$0xff]
  %v32 = vld [vmem:[#allocation2 + $0x8] sm:$0xff]
  %v33 = vld [vmem:[%s0] sm:$0xf]
  %v34 = vld [vmem:[%s0 + $0x4] sm:$0xf]
  %v35 = vld [vmem:[%s1] sm:$0xf]
  %v36 = vld [vmem:[%s1 + $0x4] sm:$0xf]
  %v37 = vld [vmem:[%s1 + $0x8] sm:$0xf]
  %v38 = vld [vmem:[%s1 + $0xc] sm:$0xf]
  %v39 = vld [vmem:[%s1 + $0x10] sm:$0xf]
  %v40 = vld [vmem:[%s1 + $0x14] sm:$0xf]
  %v41 = vld [vmem:[%s1 + $0x18] sm:$0xf]
  %v42 = vld [vmem:[%s1 + $0x1c] sm:$0xf]
  %v45 = vunpack.c.l.b16 %v33
  %v46 = vunpack.c.l.b16 %v34
  %v47 = vpack.c.b16 %v46, %v45
  %v56 = vunpack.c.l.b16 %v35
  %v57 = vunpack.c.l.b16 %v36
  %v58 = vunpack.c.l.b16 %v37
  %v59 = vunpack.c.l.b16 %v38
  %v60 = vunpack.c.l.b16 %v39
  %v61 = vunpack.c.l.b16 %v40
  %v62 = vunpack.c.l.b16 %v41
  %v63 = vunpack.c.l.b16 %v42
  %v64 = vpack.c.b16 %v57, %v56
  %v65 = vpack.c.b16 %v59, %v58
  %v66 = vpack.c.b16 %v61, %v60
  %v67 = vpack.c.b16 %v63, %v62
  %vm72 = vcmask 523264
  %v74 = vsel %vm72, %v47, 0
  %76 = vmatprep.subr.bf16.mxu0 0
  %77 = vmatpush1.bf16.msra.mxu0 %v64
  %78 = vmatprep.subr.bf16.mxu0 0
  %79 = vmatpush1.bf16.msra.mxu0 %v65
  %80 = vmatprep.subr.bf16.mxu0 0
  %81 = vmatpush1.bf16.msra.mxu0 %v66
  %82 = vmatprep.subr.bf16.mxu0 0
  %83 = vmatpush1.bf16.msra.mxu0 %v67
  %84 = vmatprep.subr.bf16.mxu0 0
  %85 = vmatpush1.bf16.msra.mxu0 0
  %86 = vmatprep.subr.bf16.mxu0 0
  %87 = vmatpush1.bf16.msra.mxu0 0
  %88 = vmatprep.subr.bf16.mxu0 0
  %89 = vmatpush1.bf16.msra.mxu0 0
  %90 = vmatprep.subr.bf16.mxu0 0
  %91 = vmatpush1.bf16.msra.mxu0 0
  %92 = vmatprep.subr.bf16.mxu0 0
  %93 = vmatpush1.bf16.msra.mxu0 0
  %94 = vmatprep.subr.bf16.mxu0 0
  %95 = vmatpush1.bf16.msra.mxu0 0
  %96 = vmatprep.subr.bf16.mxu0 0
  %97 = vmatpush1.bf16.msra.mxu0 0
  %98 = vmatprep.subr.bf16.mxu0 0
  %99 = vmatpush1.bf16.msra.mxu0 0
  %100 = vmatprep.subr.bf16.mxu0 0
  %101 = vmatpush1.bf16.msra.mxu0 0
  %102 = vmatprep.subr.bf16.mxu0 0
  %103 = vmatpush1.bf16.msra.mxu0 0
  %104 = vmatprep.subr.bf16.mxu0 0
  %105 = vmatpush1.bf16.msra.mxu0 0
  %106 = vmatprep.subr.bf16.mxu0 0
  %107 = vmatpush1.bf16.msra.mxu0 0
  %108 = vmatprep.mubr.bf16.mxu0 0
  %109 = vmatmul.mubr.bf16.gmra.mrb[0].mxu0 %v74
  %v110 = vpop.f32.mrb[0].mxu0
  %v111 = vadd.f32 0.0, %v110
  %v112 = vpop.f32.mrb[0].mxu0
  %v113 = vpop.f32.mrb[0].mxu0
  %v114 = vadd.f32 0.0, %v113
  %v115 = vpop.f32.mrb[0].mxu0
  %116 = vdwg.mxu0
  %v117 = vadd.f32 %v31, %v111
  %v118 = vadd.f32 %v32, %v114
  %vm119 = vcmask 261120
  %120 = vst.msk [vmem:[#allocation2] sm:$0xff] %vm119, %v117
  %121 = vst.msk [vmem:[#allocation2 + $0x8] sm:$0xff] %vm119, %v118
  // Predicated region
  $region30: #{roberta_prompt_forward.17} parent=0 // pred_check
    %p122 = pneg %p24
  $region31: #{roberta_prompt_forward.17} parent=0 // pred_check_branch
    %124 = sbr.rel (%p122) target = $region33
  $region32: #{roberta_prompt_forward.17} parent=0 // pred_region
    %v125 = vld [vmem:[#allocation2] sm:$0xff]
    %v126 = vld [vmem:[#allocation2 + $0x8] sm:$0xff]
    %v127 = vld [vmem:[%s2] sm:$0x1]
    %v128 = vunpack.c.l.bf16 %v127
    %v129 = vlaneseq
    %v130 = vshrl.u32 %v129, 7
    %v131 = vsub.s32 0, %v130
    %v132 = vrot.slane %v128, %v131
    %v133 = vadd.f32 %v125, %v132
    %v134 = vadd.f32 %v126, %v132
    %v135 = vld [vmem:[%s3] sm:$0xf]
    %v136 = vld [vmem:[%s3 + $0x4] sm:$0xf]
    %v137 = vunpack.c.l.bf16 %v135
    %v138 = vunpack.c.l.bf16 %v136
    %v139 = vadd.f32 %v133, %v137
    %v140 = vadd.f32 %v134, %v138
    %v141 = vsel %vm119, %v139, 0.0
    %142 = vadd.xlane.f32.xlu0 %v141
    %v143 = vpop.xlane.xlu0 %142
    %v144 = vsel %vm119, %v140, 0.0
    %145 = vadd.xlane.f32.xlu0 %v144
    %v146 = vpop.xlane.xlu0 %145
    %v147 = vrcp.pop 32.0
    %v148 = vmul.f32 %v143, %v147
    %v149 = vmul.f32 %v146, %v147
    %v150 = vsub.f32 %v139, %v148
    %v151 = vsub.f32 %v140, %v149
    %v152 = vmul.f32 %v150, %v150
    %v153 = vmul.f32 %v151, %v151
    %v154 = vsel %vm119, %v152, 0.0
    %155 = vadd.xlane.f32.xlu0 %v154
    %v156 = vpop.xlane.xlu0 %155
    %v157 = vsel %vm119, %v153, 0.0
    %158 = vadd.xlane.f32.xlu0 %v157
    %v159 = vpop.xlane.xlu0 %158
    %v160 = vmul.f32 %v156, %v147
    %v161 = vmul.f32 %v159, %v147
    %v162 = vadd.f32 %v160, 1e-05
    %v163 = vadd.f32 %v161, 1e-05
    %v164 = vrsqrt.pop %v162
    %v165 = vrsqrt.pop %v163
    %v166 = vmul.f32 %v150, %v164
    %v167 = vmul.f32 %v151, %v165
    %v168 = vld [vmem:[%s4] sm:$0x1]
    %v170 = vlaneseq
    %v171 = vshrl.u32 %v170, 7
    %v172 = vsub.s32 0, %v171
    %v173 = vrot.slane %v168, %v172
    %v175 = vmul.f32 %v166, %v173
    %v176 = vmul.f32 %v167, %v173
    %v177 = vld [vmem:[%s5] sm:$0x1]
    %v179 = vlaneseq
    %v180 = vshrl.u32 %v179, 7
    %v181 = vsub.s32 0, %v180
    %v182 = vrot.slane %v177, %v181
    %v184 = vadd.f32 %v175, %v182
    %v185 = vadd.f32 %v176, %v182
    %v186 = vpack.c.bf16 %v185, %v184
    %v188 = vunpack.c.l.b16 %v186
    %v189 = vunpack.c.h.b16 %v186
    %v190 = vpack.c.b16 %v188, %v188
    %v191 = vpack.c.b16 %v189, %v189
    %vm194 = vcmask 257024
    %195 = vst.msk [vmem:[%s6] sm:$0xf] %vm194, %v190
    %196 = vst.msk [vmem:[%s6 + $0x4] sm:$0xf] %vm194, %v191
  $region33: #{roberta_prompt_forward.17} parent=0 // pred_fallthru
    _
  // Predicated region
  $region34: #{roberta_prompt_forward.17} parent=0 // pred_check
    _
  $region35: #{roberta_prompt_forward.17} parent=0 // pred_check_branch
    %198 = sbr.rel (0) target = $region37
  $region36: #{roberta_prompt_forward.17} parent=0 // pred_region
    _
  $region37: #{roberta_prompt_forward.17} parent=0 // pred_fallthru
    _
  // Predicated region
  $region38: #{roberta_prompt_forward.17} parent=0 // pred_check
    _
  $region39: #{roberta_prompt_forward.17} parent=0 // pred_check_branch
    %200 = sbr.rel (0) target = $region41
  $region40: #{roberta_prompt_forward.17} parent=0 // pred_region
    _
  $region41: #{roberta_prompt_forward.17} parent=0 // pred_fallthru
    _

</llo_original>
